<compile_context>
chip_gen: v5e
topology: v5e:2x2
jax: 0.10.0
libtpu: 0.0.40
codegen_flags: <defaults>
</compile_context>

<pallas_src>
import numpy as np
import jax
import jax.numpy as jnp
from jax.experimental import pallas as pl
from jax.experimental.pallas import tpu as pltpu

# ----------------- module-consistent configuration -----------------
OBS_SHAPE = (3, 16, 16)      # (c, h, w)
CHANNELS = (32, 16, 8)
KERNELS = (4, 4, 4)
STRIDES = (2, 2, 2)
PADDINGS = (1, 1, 1)
LATENT_DIM = 32


def conv_out(h_in, padding, kernel_size, stride):
    return int((h_in + 2.0 * padding - (kernel_size - 1.0) - 1.0) / stride + 1.0)


def conv_out_shape(h_in, padding, kernel_size, stride):
    return tuple(conv_out(x, padding, kernel_size, stride) for x in h_in)


def _round_up(a, b):
    return ((a + b - 1) // b) * b


# ----------------- ConvTranspose2d -> dense matmul lowering -----------------
def convT_dense(weight, stride, pad, ih, iw):
    """weight: PyTorch ConvTranspose2d layout (Cin, Cout, Kh, Kw).
    Returns W_dense[Cin*IH*IW, Cout*OH*OW] s.t.
      out_flat = in_flat @ W_dense  reproduces ConvTranspose2d (no bias)."""
    cin, cout, kh, kw = weight.shape
    oh = (ih - 1) * stride - 2 * pad + kh
    ow = (iw - 1) * stride - 2 * pad + kw
    W = np.zeros((cin * ih * iw, cout * oh * ow), dtype=np.float32)
    for ci in range(cin):
        for i in range(ih):
            for j in range(iw):
                row = (ci * ih + i) * iw + j
                oi0 = i * stride - pad
                oj0 = j * stride - pad
                for co in range(cout):
                    for ki in range(kh):
                        oi = oi0 + ki
                        if oi < 0 or oi >= oh:
                            continue
                        for kj in range(kw):
                            oj = oj0 + kj
                            if oj < 0 or oj >= ow:
                                continue
                            col = (co * oh + oi) * ow + oj
                            W[row, col] += float(weight[ci, co, ki, kj])
    return W, oh, ow


# ----------------------------- Pallas kernel -----------------------------
def _mish(x):
    # mish(x) = x * tanh(softplus(x)) = x * (t - 1) / (t + 1),  t = (1 + e^x)^2
    # One EUP exp + one approx reciprocal (EUP) instead of exp+log+tanh.
    # Clamp at 20: for x>20, (t-1)/(t+1) == 1 to f32 precision -> mish(x)==x.
    e = jnp.exp(jnp.minimum(x, 20.0))
    t = (1.0 + e) * (1.0 + e)
    return x * (t - 1.0) * pl.reciprocal(t + 1.0, approx=True)


def vae_decoder_kernel(x_ref, w_up_ref, b_up_ref, w1_ref, b1_ref,
                       w2_ref, b2_ref, w3_ref, b3_ref, out_ref):
    # x_ref: (TN, 32) bf16 tile of the (padded) batch. Weights bf16, biases f32.
    x = x_ref[...]
    # upsample (nn.Linear), no activation before the first conv layer
    h = jnp.dot(x, w_up_ref[...], preferred_element_type=jnp.float32) + b_up_ref[...]
    # ConvTranspose2d #1 + Mish
    h = jnp.dot(h.astype(jnp.bfloat16), w1_ref[...],
                preferred_element_type=jnp.float32) + b1_ref[...]
    h = _mish(h)
    # ConvTranspose2d #2 + Mish
    h = jnp.dot(h.astype(jnp.bfloat16), w2_ref[...],
                preferred_element_type=jnp.float32) + b2_ref[...]
    h = _mish(h)
    # ConvTranspose2d #3 + Sigmoid (single full-width f32 store, 768 = 6*128 lanes)
    h = jnp.dot(h.astype(jnp.bfloat16), w3_ref[...],
                preferred_element_type=jnp.float32) + b3_ref[...]
    out_ref[...] = jax.nn.sigmoid(h)


def vae_decoder_forward(x, params, tn=None):
    batch_shape = x.shape[:-1]
    n = int(np.prod(batch_shape)) if batch_shape else 1
    x2 = x.reshape(n, LATENT_DIM)

    # Batch tile: multiple of 8 sublanes; cap at 256 rows so activations +
    # resident weights + double buffers stay far under v7x's 64 MiB VMEM.
    if tn is None:
        tn = 256 if n >= 256 else max(8, _round_up(n, 8))
    tn = max(8, _round_up(tn, 8))
    n_pad = _round_up(max(n, tn), tn)
    if n_pad != n:
        x2 = jnp.pad(x2, ((0, n_pad - n), (0, 0)))
    x2 = x2.astype(jnp.bfloat16)

    up_out = params["w_up"].shape[1]
    d1 = params["W1"].shape[1]
    d2 = params["W2"].shape[1]
    out_dim = params["W3"].shape[1]

    operands = (x2, params["w_up"], params["b_up"],
                params["W1"], params["B1"],
                params["W2"], params["B2"],
                params["W3"], params["B3"])

    # x/out tiles move with the grid; weights/biases use a constant index_map
    # so Pallas keeps them resident in VMEM across all batch tiles.
    in_specs = [pl.BlockSpec((tn, LATENT_DIM), lambda i: (i, 0))]
    in_specs += [pl.BlockSpec(a.shape, lambda i: (0, 0)) for a in operands[1:]]
    out_spec = pl.BlockSpec((tn, out_dim), lambda i: (i, 0))

    mm_terms = (LATENT_DIM * up_out + up_out * d1 + d1 * d2 + d2 * out_dim)
    weight_bytes = 2 * mm_terms + 4 * (up_out + d1 + d2 + out_dim)
    cost = pl.CostEstimate(
        flops=int(2 * n_pad * mm_terms),
        transcendentals=int(n_pad * (d1 + d2 + out_dim)),
        bytes_accessed=int(weight_bytes + n_pad * (LATENT_DIM * 2 + out_dim * 4)),
    )

    out = pl.pallas_call(
        vae_decoder_kernel,
        out_shape=jax.ShapeDtypeStruct((n_pad, out_dim), jnp.float32),
        grid=(n_pad // tn,),
        in_specs=in_specs,
        out_specs=out_spec,
        compiler_params=pltpu.CompilerParams(
            dimension_semantics=("parallel",),
            vmem_limit_bytes=32 * 1024 * 1024,
        ),
        cost_estimate=cost,
    )(*operands)

    out = out[:n]
    c, h, w = OBS_SHAPE
    return out.reshape(*batch_shape, c, h, w)


# ------------------------- deterministic parameters -------------------------
def init_params(key):
    c, h, w = OBS_SHAPE
    conv1 = conv_out_shape((h, w), PADDINGS[0], KERNELS[0], STRIDES[0])
    conv2 = conv_out_shape(conv1, PADDINGS[1], KERNELS[1], STRIDES[1])
    conv3 = conv_out_shape(conv2, PADDINGS[2], KERNELS[2], STRIDES[2])

    ks = jax.random.split(key, 8)

    def rnd(k, shape, scale=0.1):
        return np.asarray(jax.random.normal(k, shape, dtype=jnp.float32)) * scale

    up_out = CHANNELS[0] * conv3[0] * conv3[1]
    # nn.Linear weight is (out,in) in PyTorch; we store its transpose (in,out).
    w_up = rnd(ks[0], (LATENT_DIM, up_out))
    b_up = rnd(ks[1], (1, up_out))

    # ConvTranspose2d raw weights, PyTorch layout (Cin, Cout, Kh, Kw)
    wT1 = rnd(ks[2], (CHANNELS[0], CHANNELS[1], KERNELS[0], KERNELS[0]))
    bT1 = rnd(ks[3], (CHANNELS[1],))
    wT2 = rnd(ks[4], (CHANNELS[1], CHANNELS[2], KERNELS[1], KERNELS[1]))
    bT2 = rnd(ks[5], (CHANNELS[2],))
    wT3 = rnd(ks[6], (CHANNELS[2], c, KERNELS[2], KERNELS[2]))
    bT3 = rnd(ks[7], (c,))

    ih1, iw1 = conv3
    W1, oh1, ow1 = convT_dense(wT1, STRIDES[0], PADDINGS[0], ih1, iw1)
    W2, oh2, ow2 = convT_dense(wT2, STRIDES[1], PADDINGS[1], oh1, ow1)
    W3, oh3, ow3 = convT_dense(wT3, STRIDES[2], PADDINGS[2], oh2, ow2)
    assert (oh3, ow3) == (h, w)

    B1 = np.repeat(bT1, oh1 * ow1).reshape(1, -1).astype(np.float32)
    B2 = np.repeat(bT2, oh2 * ow2).reshape(1, -1).astype(np.float32)
    B3 = np.repeat(bT3, oh3 * ow3).reshape(1, -1).astype(np.float32)

    # Matmul operands stored in bf16 (halves weight DMA, native MXU rate);
    # biases stay f32 (added to the f32 accumulator).
    dense = dict(
        w_up=jnp.asarray(w_up, dtype=jnp.bfloat16),
        b_up=jnp.asarray(b_up, dtype=jnp.float32),
        W1=jnp.asarray(W1, dtype=jnp.bfloat16), B1=jnp.asarray(B1),
        W2=jnp.asarray(W2, dtype=jnp.bfloat16), B2=jnp.asarray(B2),
        W3=jnp.asarray(W3, dtype=jnp.bfloat16), B3=jnp.asarray(B3),
    )
    raw = dict(w_up=w_up, b_up=b_up, wT1=wT1, bT1=bT1, wT2=wT2, bT2=bT2,
               wT3=wT3, bT3=bT3, conv_shape=(CHANNELS[0], *conv3))
    return dense, raw


# ------------------------- pure-JAX reference (NCHW, f32) -------------------------
def _conv_transpose_nchw(x, w, b, stride, pad):
    kh, kw = w.shape[2], w.shape[3]
    # ConvTranspose2d == lhs-dilated conv with spatially-flipped, axis-swapped kernel
    w_conv = jnp.flip(jnp.asarray(w), axis=(2, 3)).transpose(1, 0, 2, 3)  # (Cout,Cin,Kh,Kw)
    y = jax.lax.conv_general_dilated(
        x, w_conv,
        window_strides=(1, 1),
        padding=[(kh - 1 - pad, kh - 1 - pad), (kw - 1 - pad, kw - 1 - pad)],
        lhs_dilation=(stride, stride),
        dimension_numbers=("NCHW", "OIHW", "NCHW"))
    return y + jnp.asarray(b).reshape(1, -1, 1, 1)


def reference_forward(x, raw):
    batch_shape = x.shape[:-1]
    n = int(np.prod(batch_shape)) if batch_shape else 1
    h = x.reshape(n, LATENT_DIM) @ jnp.asarray(raw["w_up"]) + jnp.asarray(raw["b_up"])
    fmap = h.reshape(n, *raw["conv_shape"])
    fmap = _conv_transpose_nchw(fmap, raw["wT1"], raw["bT1"], STRIDES[0], PADDINGS[0])
    fmap = fmap * jnp.tanh(jax.nn.softplus(fmap))
    fmap = _conv_transpose_nchw(fmap, raw["wT2"], raw["bT2"], STRIDES[1], PADDINGS[1])
    fmap = fmap * jnp.tanh(jax.nn.softplus(fmap))
    fmap = _conv_transpose_nchw(fmap, raw["wT3"], raw["bT3"], STRIDES[2], PADDINGS[2])
    out = jax.nn.sigmoid(fmap)
    return out.reshape(*batch_shape, *OBS_SHAPE)


# ----------------------------------- main -----------------------------------
if __name__ == "__main__":
    key = jax.random.PRNGKey(0)
    k_param, k_x1, k_x2 = jax.random.split(key, 3)
    dense_params, raw_params = init_params(k_param)

    # Primary small test (batch=2): single padded tile (n padded to 8).
    batch = 2
    x = jax.random.normal(k_x1, (batch, LATENT_DIM), dtype=jnp.float32)
    out = jax.block_until_ready(vae_decoder_forward(x, dense_params))
    assert out.shape == (batch, *OBS_SHAPE), out.shape
    ref = jax.block_until_ready(reference_forward(x, raw_params))
    # bf16 matmul inputs + approx reciprocal in Mish -> compare at bf16-level tolerance.
    np.testing.assert_allclose(np.asarray(out), np.asarray(ref), rtol=5e-3, atol=5e-3)

    # Exercise the multi-tile grid path (resident weights, ragged last tile).
    x_big = jax.random.normal(k_x2, (20, LATENT_DIM), dtype=jnp.float32)
    out_big = jax.block_until_ready(vae_decoder_forward(x_big, dense_params, tn=8))
    ref_big = jax.block_until_ready(reference_forward(x_big, raw_params))
    assert out_big.shape == (20, *OBS_SHAPE), out_big.shape
    np.testing.assert_allclose(np.asarray(out_big), np.asarray(ref_big), rtol=5e-3, atol=5e-3)

    print("KERNEL_OK")
</pallas_src>

<mosaic_0001>
module attributes {stable_mosaic.version = 11 : i64} {
  func.func @vae_decoder_kernel(%arg0: i32, %arg1: memref<8x32xbf16, #tpu.memory_space<vmem>>, %arg2: memref<32x128xbf16, #tpu.memory_space<vmem>>, %arg3: memref<1x128xf32, #tpu.memory_space<vmem>>, %arg4: memref<128x256xbf16, #tpu.memory_space<vmem>>, %arg5: memref<1x256xf32, #tpu.memory_space<vmem>>, %arg6: memref<256x512xbf16, #tpu.memory_space<vmem>>, %arg7: memref<1x512xf32, #tpu.memory_space<vmem>>, %arg8: memref<512x768xbf16, #tpu.memory_space<vmem>>, %arg9: memref<1x768xf32, #tpu.memory_space<vmem>>, %arg10: memref<8x768xf32, #tpu.memory_space<vmem>>) attributes {dimension_semantics = [#tpu.dimension_semantics<parallel>], iteration_bounds = array<i64: 1>, scalar_prefetch = 0 : i64, scratch_operands = 0 : i64, tpu.core_type = #tpu.core_type<tc>, window_params = [{transform_indices = @transform_0, window_bounds = array<i64: 8, 32>}, {pipeline_mode = #tpu.pipeline_mode<synchronous>, transform_indices = @transform_1, window_bounds = array<i64: 32, 128>}, {pipeline_mode = #tpu.pipeline_mode<synchronous>, transform_indices = @transform_2, window_bounds = array<i64: 1, 128>}, {pipeline_mode = #tpu.pipeline_mode<synchronous>, transform_indices = @transform_3, window_bounds = array<i64: 128, 256>}, {pipeline_mode = #tpu.pipeline_mode<synchronous>, transform_indices = @transform_4, window_bounds = array<i64: 1, 256>}, {pipeline_mode = #tpu.pipeline_mode<synchronous>, transform_indices = @transform_5, window_bounds = array<i64: 256, 512>}, {pipeline_mode = #tpu.pipeline_mode<synchronous>, transform_indices = @transform_6, window_bounds = array<i64: 1, 512>}, {pipeline_mode = #tpu.pipeline_mode<synchronous>, transform_indices = @transform_7, window_bounds = array<i64: 512, 768>}, {pipeline_mode = #tpu.pipeline_mode<synchronous>, transform_indices = @transform_8, window_bounds = array<i64: 1, 768>}, {transform_indices = @transform_9, window_bounds = array<i64: 8, 768>}]} {
    %c0 = arith.constant 0 : index
    %c0_0 = arith.constant 0 : index
    %0 = vector.load %arg1[%c0, %c0_0] : memref<8x32xbf16, #tpu.memory_space<vmem>>, vector<8x32xbf16>
    %c0_1 = arith.constant 0 : index
    %c0_2 = arith.constant 0 : index
    %1 = vector.load %arg2[%c0_1, %c0_2] : memref<32x128xbf16, #tpu.memory_space<vmem>>, vector<32x128xbf16>
    %cst = arith.constant dense<0.000000e+00> : vector<8x128xf32>
    %2 = tpu.matmul %0, %1, %cst {dimension_numbers = #tpu.dot_dimension_numbers<[1], [0], [0], [1], [0, 0, 1, 1], [], []>} : vector<8x32xbf16>, vector<32x128xbf16>, vector<8x128xf32> -> vector<8x128xf32>
    %c0_3 = arith.constant 0 : index
    %c0_4 = arith.constant 0 : index
    %3 = vector.load %arg3[%c0_3, %c0_4] : memref<1x128xf32, #tpu.memory_space<vmem>>, vector<1x128xf32>
    %4 = vector.broadcast %3 : vector<1x128xf32> to vector<8x128xf32>
    %5 = arith.addf %2, %4 : vector<8x128xf32>
    %6 = arith.truncf %5 : vector<8x128xf32> to vector<8x128xbf16>
    %c0_5 = arith.constant 0 : index
    %c0_6 = arith.constant 0 : index
    %7 = vector.load %arg4[%c0_5, %c0_6] : memref<128x256xbf16, #tpu.memory_space<vmem>>, vector<128x256xbf16>
    %cst_7 = arith.constant dense<0.000000e+00> : vector<8x256xf32>
    %8 = tpu.matmul %6, %7, %cst_7 {dimension_numbers = #tpu.dot_dimension_numbers<[1], [0], [0], [1], [0, 0, 1, 1], [], []>} : vector<8x128xbf16>, vector<128x256xbf16>, vector<8x256xf32> -> vector<8x256xf32>
    %c0_8 = arith.constant 0 : index
    %c0_9 = arith.constant 0 : index
    %9 = vector.load %arg5[%c0_8, %c0_9] : memref<1x256xf32, #tpu.memory_space<vmem>>, vector<1x256xf32>
    %10 = vector.broadcast %9 : vector<1x256xf32> to vector<8x256xf32>
    %11 = arith.addf %8, %10 : vector<8x256xf32>
    %cst_10 = arith.constant 2.000000e+01 : f32
    %12 = vector.broadcast %cst_10 : f32 to vector<8x256xf32>
    %13 = arith.minimumf %11, %12 : vector<8x256xf32>
    %14 = math.exp %13 : vector<8x256xf32>
    %cst_11 = arith.constant 1.000000e+00 : f32
    %15 = vector.broadcast %cst_11 : f32 to vector<8x256xf32>
    %16 = arith.addf %15, %14 : vector<8x256xf32>
    %cst_12 = arith.constant 1.000000e+00 : f32
    %17 = vector.broadcast %cst_12 : f32 to vector<8x256xf32>
    %18 = arith.addf %17, %14 : vector<8x256xf32>
    %19 = arith.mulf %16, %18 : vector<8x256xf32>
    %cst_13 = arith.constant 1.000000e+00 : f32
    %20 = vector.broadcast %cst_13 : f32 to vector<8x256xf32>
    %21 = arith.subf %19, %20 : vector<8x256xf32>
    %22 = arith.mulf %11, %21 : vector<8x256xf32>
    %cst_14 = arith.constant 1.000000e+00 : f32
    %23 = vector.broadcast %cst_14 : f32 to vector<8x256xf32>
    %24 = arith.addf %19, %23 : vector<8x256xf32>
    %25 = tpu.reciprocal %24 {approx = true} : vector<8x256xf32> -> vector<8x256xf32>
    %26 = arith.mulf %22, %25 : vector<8x256xf32>
    %27 = arith.truncf %26 : vector<8x256xf32> to vector<8x256xbf16>
    %c0_15 = arith.constant 0 : index
    %c0_16 = arith.constant 0 : index
    %28 = vector.load %arg6[%c0_15, %c0_16] : memref<256x512xbf16, #tpu.memory_space<vmem>>, vector<256x512xbf16>
    %cst_17 = arith.constant dense<0.000000e+00> : vector<8x512xf32>
    %29 = tpu.matmul %27, %28, %cst_17 {dimension_numbers = #tpu.dot_dimension_numbers<[1], [0], [0], [1], [0, 0, 1, 1], [], []>} : vector<8x256xbf16>, vector<256x512xbf16>, vector<8x512xf32> -> vector<8x512xf32>
    %c0_18 = arith.constant 0 : index
    %c0_19 = arith.constant 0 : index
    %30 = vector.load %arg7[%c0_18, %c0_19] : memref<1x512xf32, #tpu.memory_space<vmem>>, vector<1x512xf32>
    %31 = vector.broadcast %30 : vector<1x512xf32> to vector<8x512xf32>
    %32 = arith.addf %29, %31 : vector<8x512xf32>
    %cst_20 = arith.constant 2.000000e+01 : f32
    %33 = vector.broadcast %cst_20 : f32 to vector<8x512xf32>
    %34 = arith.minimumf %32, %33 : vector<8x512xf32>
    %35 = math.exp %34 : vector<8x512xf32>
    %cst_21 = arith.constant 1.000000e+00 : f32
    %36 = vector.broadcast %cst_21 : f32 to vector<8x512xf32>
    %37 = arith.addf %36, %35 : vector<8x512xf32>
    %cst_22 = arith.constant 1.000000e+00 : f32
    %38 = vector.broadcast %cst_22 : f32 to vector<8x512xf32>
    %39 = arith.addf %38, %35 : vector<8x512xf32>
    %40 = arith.mulf %37, %39 : vector<8x512xf32>
    %cst_23 = arith.constant 1.000000e+00 : f32
    %41 = vector.broadcast %cst_23 : f32 to vector<8x512xf32>
    %42 = arith.subf %40, %41 : vector<8x512xf32>
    %43 = arith.mulf %32, %42 : vector<8x512xf32>
    %cst_24 = arith.constant 1.000000e+00 : f32
    %44 = vector.broadcast %cst_24 : f32 to vector<8x512xf32>
    %45 = arith.addf %40, %44 : vector<8x512xf32>
    %46 = tpu.reciprocal %45 {approx = true} : vector<8x512xf32> -> vector<8x512xf32>
    %47 = arith.mulf %43, %46 : vector<8x512xf32>
    %48 = arith.truncf %47 : vector<8x512xf32> to vector<8x512xbf16>
    %c0_25 = arith.constant 0 : index
    %c0_26 = arith.constant 0 : index
    %49 = vector.load %arg8[%c0_25, %c0_26] : memref<512x768xbf16, #tpu.memory_space<vmem>>, vector<512x768xbf16>
    %cst_27 = arith.constant dense<0.000000e+00> : vector<8x768xf32>
    %50 = tpu.matmul %48, %49, %cst_27 {dimension_numbers = #tpu.dot_dimension_numbers<[1], [0], [0], [1], [0, 0, 1, 1], [], []>} : vector<8x512xbf16>, vector<512x768xbf16>, vector<8x768xf32> -> vector<8x768xf32>
    %c0_28 = arith.constant 0 : index
    %c0_29 = arith.constant 0 : index
    %51 = vector.load %arg9[%c0_28, %c0_29] : memref<1x768xf32, #tpu.memory_space<vmem>>, vector<1x768xf32>
    %52 = vector.broadcast %51 : vector<1x768xf32> to vector<8x768xf32>
    %53 = arith.addf %50, %52 : vector<8x768xf32>
    %54 = arith.negf %53 : vector<8x768xf32>
    %55 = math.exp %54 : vector<8x768xf32>
    %cst_30 = arith.constant 1.000000e+00 : f32
    %56 = vector.broadcast %cst_30 : f32 to vector<8x768xf32>
    %57 = arith.addf %56, %55 : vector<8x768xf32>
    %58 = arith.divf %56, %57 : vector<8x768xf32>
    %c0_31 = arith.constant 0 : index
    %c0_32 = arith.constant 0 : index
    %59 = vector.load %arg10[%c0_31, %c0_32] : memref<8x768xf32, #tpu.memory_space<vmem>>, vector<8x768xf32>
    tpu.vector_store %arg10[%c0_31, %c0_32], %58 {strides = array<i32>} : memref<8x768xf32, #tpu.memory_space<vmem>>, vector<8x768xf32>,
    return
  }
  func.func @transform_0(%arg0: i32) -> (i32, i32) {
    %c0_i32 = arith.constant 0 : i32
    %c0_i32_0 = arith.constant 0 : i32
    return %arg0, %c0_i32 : i32, i32
  }
  func.func @transform_1(%arg0: i32) -> (i32, i32) {
    %c0_i32 = arith.constant 0 : i32
    %c0_i32_0 = arith.constant 0 : i32
    %c0_i32_1 = arith.constant 0 : i32
    return %c0_i32, %c0_i32_0 : i32, i32
  }
  func.func @transform_2(%arg0: i32) -> (i32, i32) {
    %c0_i32 = arith.constant 0 : i32
    %c0_i32_0 = arith.constant 0 : i32
    %c0_i32_1 = arith.constant 0 : i32
    return %c0_i32, %c0_i32_0 : i32, i32
  }
  func.func @transform_3(%arg0: i32) -> (i32, i32) {
    %c0_i32 = arith.constant 0 : i32
    %c0_i32_0 = arith.constant 0 : i32
    %c0_i32_1 = arith.constant 0 : i32
    return %c0_i32, %c0_i32_0 : i32, i32
  }
  func.func @transform_4(%arg0: i32) -> (i32, i32) {
    %c0_i32 = arith.constant 0 : i32
    %c0_i32_0 = arith.constant 0 : i32
    %c0_i32_1 = arith.constant 0 : i32
    return %c0_i32, %c0_i32_0 : i32, i32
  }
  func.func @transform_5(%arg0: i32) -> (i32, i32) {
    %c0_i32 = arith.constant 0 : i32
    %c0_i32_0 = arith.constant 0 : i32
    %c0_i32_1 = arith.constant 0 : i32
    return %c0_i32, %c0_i32_0 : i32, i32
  }
  func.func @transform_6(%arg0: i32) -> (i32, i32) {
    %c0_i32 = arith.constant 0 : i32
    %c0_i32_0 = arith.constant 0 : i32
    %c0_i32_1 = arith.constant 0 : i32
    return %c0_i32, %c0_i32_0 : i32, i32
  }
  func.func @transform_7(%arg0: i32) -> (i32, i32) {
    %c0_i32 = arith.constant 0 : i32
    %c0_i32_0 = arith.constant 0 : i32
    %c0_i32_1 = arith.constant 0 : i32
    return %c0_i32, %c0_i32_0 : i32, i32
  }
  func.func @transform_8(%arg0: i32) -> (i32, i32) {
    %c0_i32 = arith.constant 0 : i32
    %c0_i32_0 = arith.constant 0 : i32
    %c0_i32_1 = arith.constant 0 : i32
    return %c0_i32, %c0_i32_0 : i32, i32
  }
  func.func @transform_9(%arg0: i32) -> (i32, i32) {
    %c0_i32 = arith.constant 0 : i32
    %c0_i32_0 = arith.constant 0 : i32
    return %arg0, %c0_i32 : i32, i32
  }
}

</mosaic_0001>

<llo_original>
// kernel: tpu_custom_call.1
$region0: #{tpu_custom_call.1}
  #allocation0 [shape = 'u32[]', space=smem, size = 0x4, offset = 0x4, fixed_abs, tag = 'smem constant byte address 0x4 - core index']
  #allocation1 [shape = 'u32[72,128]{1,0:T(1,128)}', space=vmem, size = 0x9000, scoped, tag = 'internal scratch']
  %s0 = inlined_call_operand.hbm [shape: bf16[8,32], index: 0, kind: input, shape index: {}]
  %s1 = inlined_call_operand.hbm [shape: bf16[32,128], index: 1, kind: input, shape index: {}]
  %s2 = inlined_call_operand.vmem [shape: f32[1,128], index: 2, kind: input, shape index: {}]
  %s3 = inlined_call_operand.hbm [shape: bf16[128,256], index: 3, kind: input, shape index: {}]
  %s4 = inlined_call_operand.hbm [shape: f32[1,256], index: 4, kind: input, shape index: {}]
  %s5 = inlined_call_operand.hbm [shape: bf16[256,512], index: 5, kind: input, shape index: {}]
  %s6 = inlined_call_operand.hbm [shape: f32[1,512], index: 6, kind: input, shape index: {}]
  %s7 = inlined_call_operand.hbm [shape: bf16[512,768], index: 7, kind: input, shape index: {}]
  %s8 = inlined_call_operand.vmem [shape: f32[1,768], index: 8, kind: input, shape index: {}]
  %s9 = inlined_call_operand.hbm [shape: f32[8,768], index: 9, kind: output, shape index: {}]
  %s10 = sld [smem:[#allocation0]]
  $region74: #{tpu_custom_call.1} parent=0
    _
  %s12 = ssub.s32 1, %s10
  %s13 = scalar_select 0, %s12, %s10
  $region1: #{tpu_custom_call.1} parent=0
    #allocation2 [shape = 'u8[2048]{0}', space=vmem, size = 0x800, scoped, tag = 'input window, operand 0, single buffered']
    #allocation3 [shape = 's32[1]{0}', space=sflag, size = 0x4, scoped, tag = 'scoped memory for tpu_custom_call.1']
    #allocation4 [shape = 's32[1]{0}', space=sflag, size = 0x4, scoped, tag = 'scoped memory for tpu_custom_call.1']
    #allocation5 [shape = 'u8[8192]{0}', space=vmem, size = 0x2000, scoped, tag = 'input window, operand 1, single buffered']
    #allocation6 [shape = 's32[1]{0}', space=sflag, size = 0x4, scoped, tag = 'scoped memory for tpu_custom_call.1']
    #allocation7 [shape = 'u8[65536]{0}', space=vmem, size = 0x10000, scoped, tag = 'input window, operand 3, single buffered']
    #allocation8 [shape = 'u8[1024]{0}', space=vmem, size = 0x400, scoped, tag = 'input window, operand 4, single buffered']
    #allocation9 [shape = 's32[1]{0}', space=sflag, size = 0x4, scoped, tag = 'scoped memory for tpu_custom_call.1']
    #allocation10 [shape = 'u8[262144]{0}', space=vmem, size = 0x40000, scoped, tag = 'input window, operand 5, single buffered']
    #allocation11 [shape = 'u8[2048]{0}', space=vmem, size = 0x800, scoped, tag = 'input window, operand 6, single buffered']
    #allocation12 [shape = 's32[1]{0}', space=sflag, size = 0x4, scoped, tag = 'scoped memory for tpu_custom_call.1']
    #allocation13 [shape = 'u8[786432]{0}', space=vmem, size = 0xc0000, scoped, tag = 'input window, operand 7, single buffered']
    #allocation14 [shape = 'u8[24576]{0}', space=vmem, size = 0x6000, scoped, tag = 'output window, operand 0, single buffered']
    %14 = vsyncpa [#allocation3], 0
    %15 = vsyncpa [#allocation6], 0
    %16 = vsyncpa [#allocation9], 0
    %17 = vsyncpa [#allocation12], 0
    %18 = vsyncpa [#allocation4], 0
    // Predicated region
    $region2: #{tpu_custom_call.1} parent=1 // pred_check
      _
    $region3: #{tpu_custom_call.1} parent=1 // pred_check_branch
      %20 = sbr.rel (0) target = $region5
    $region4: #{tpu_custom_call.1} parent=1 // pred_region
      %22 = vsyncadd [#allocation3], 0
      %s24 = sshll.u32 %s0, 4
      %s25 = int_to_ptr.hbm [resolvable:$true] %s24
      %s26 = sshll.u32 [#allocation2], 4
      %s27 = int_to_ptr.vmem [resolvable:$true] %s26
      %29 = dma.hbm_to_vmem [thread:$0]  %s25, 64, %s27, [#allocation3]
    $region5: #{tpu_custom_call.1} parent=1 // pred_fallthru
      _
    // Predicated region
    $region6: #{tpu_custom_call.1} parent=1 // pred_check
      _
    $region7: #{tpu_custom_call.1} parent=1 // pred_check_branch
      %31 = sbr.rel (0) target = $region9
    $region8: #{tpu_custom_call.1} parent=1 // pred_region
      %33 = vsyncadd [#allocation6], 0
      %s34 = sshll.u32 %s1, 4
      %s35 = int_to_ptr.hbm [resolvable:$true] %s34
      %s36 = sshll.u32 [#allocation5], 4
      %s37 = int_to_ptr.vmem [resolvable:$true] %s36
      %42 = dma.hbm_to_vmem [thread:$0]  %s35, 256, %s37, [#allocation6], 64, 64, 4
    $region9: #{tpu_custom_call.1} parent=1 // pred_fallthru
      _
    // Predicated region
    $region10: #{tpu_custom_call.1} parent=1 // pred_check
      _
    $region11: #{tpu_custom_call.1} parent=1 // pred_check_branch
      %44 = sbr.rel (0) target = $region13
    $region12: #{tpu_custom_call.1} parent=1 // pred_region
      _
    $region13: #{tpu_custom_call.1} parent=1 // pred_fallthru
      _
    // Predicated region
    $region14: #{tpu_custom_call.1} parent=1 // pred_check
      _
    $region15: #{tpu_custom_call.1} parent=1 // pred_check_branch
      %46 = sbr.rel (0) target = $region17
    $region16: #{tpu_custom_call.1} parent=1 // pred_region
      %48 = vsyncadd [#allocation6], 0
      %s49 = sshll.u32 %s3, 4
      %s50 = int_to_ptr.hbm [resolvable:$true] %s49
      %s51 = sshll.u32 [#allocation7], 4
      %s52 = int_to_ptr.vmem [resolvable:$true] %s51
      %57 = dma.hbm_to_vmem [thread:$0]  %s50, 2048, %s52, [#allocation6], 128, 128, 8
    $region17: #{tpu_custom_call.1} parent=1 // pred_fallthru
      _
    // Predicated region
    $region18: #{tpu_custom_call.1} parent=1 // pred_check
      _
    $region19: #{tpu_custom_call.1} parent=1 // pred_check_branch
      %59 = sbr.rel (0) target = $region21
    $region20: #{tpu_custom_call.1} parent=1 // pred_region
      %61 = vsyncadd [#allocation9], 0
      %s63 = sshll.u32 %s4, 4
      %s64 = int_to_ptr.hbm [resolvable:$true] %s63
      %s65 = sshll.u32 [#allocation8], 4
      %s66 = int_to_ptr.vmem [resolvable:$true] %s65
      %68 = dma.hbm_to_vmem [thread:$0]  %s64, 32, %s66, [#allocation9]
    $region21: #{tpu_custom_call.1} parent=1 // pred_fallthru
      _
    // Predicated region
    $region22: #{tpu_custom_call.1} parent=1 // pred_check
      _
    $region23: #{tpu_custom_call.1} parent=1 // pred_check_branch
      %70 = sbr.rel (0) target = $region25
    $region24: #{tpu_custom_call.1} parent=1 // pred_region
      %72 = vsyncadd [#allocation9], 0
      %s73 = sshll.u32 %s5, 4
      %s74 = int_to_ptr.hbm [resolvable:$true] %s73
      %s75 = sshll.u32 [#allocation10], 4
      %s76 = int_to_ptr.vmem [resolvable:$true] %s75
      %81 = dma.hbm_to_vmem [thread:$0]  %s74, 8192, %s76, [#allocation9], 256, 256, 16
    $region25: #{tpu_custom_call.1} parent=1 // pred_fallthru
      _
    // Predicated region
    $region26: #{tpu_custom_call.1} parent=1 // pred_check
      _
    $region27: #{tpu_custom_call.1} parent=1 // pred_check_branch
      %83 = sbr.rel (0) target = $region29
    $region28: #{tpu_custom_call.1} parent=1 // pred_region
      %85 = vsyncadd [#allocation12], 0
      %s87 = sshll.u32 %s6, 4
      %s88 = int_to_ptr.hbm [resolvable:$true] %s87
      %s89 = sshll.u32 [#allocation11], 4
      %s90 = int_to_ptr.vmem [resolvable:$true] %s89
      %92 = dma.hbm_to_vmem [thread:$0]  %s88, 64, %s90, [#allocation12]
    $region29: #{tpu_custom_call.1} parent=1 // pred_fallthru
      _
    // Predicated region
    $region30: #{tpu_custom_call.1} parent=1 // pred_check
      _
    $region31: #{tpu_custom_call.1} parent=1 // pred_check_branch
      %94 = sbr.rel (0) target = $region33
    $region32: #{tpu_custom_call.1} parent=1 // pred_region
      %96 = vsyncadd [#allocation12], 0
      %s97 = sshll.u32 %s7, 4
      %s98 = int_to_ptr.hbm [resolvable:$true] %s97
      %s99 = sshll.u32 [#allocation13], 4
      %s100 = int_to_ptr.vmem [resolvable:$true] %s99
      %105 = dma.hbm_to_vmem [thread:$0]  %s98, 24576, %s100, [#allocation12], 384, 384, 24
    $region33: #{tpu_custom_call.1} parent=1 // pred_fallthru
      _
    // Predicated region
    $region34: #{tpu_custom_call.1} parent=1 // pred_check
      _
    $region35: #{tpu_custom_call.1} parent=1 // pred_check_branch
      %107 = sbr.rel (0) target = $region37
    $region36: #{tpu_custom_call.1} parent=1 // pred_region
      _
    $region37: #{tpu_custom_call.1} parent=1 // pred_fallthru
      _
    // Predicated region
    $region38: #{tpu_custom_call.1} parent=1 // pred_check
      _
    $region39: #{tpu_custom_call.1} parent=1 // pred_check_branch
      %109 = sbr.rel (0) target = $region41
    $region40: #{tpu_custom_call.1} parent=1 // pred_region
      %111 = dma.done [#allocation3], 64
    $region41: #{tpu_custom_call.1} parent=1 // pred_fallthru
      _
    // Predicated region
    $region42: #{tpu_custom_call.1} parent=1 // pred_check
      _
    $region43: #{tpu_custom_call.1} parent=1 // pred_check_branch
      %113 = sbr.rel (0) target = $region45
    $region44: #{tpu_custom_call.1} parent=1 // pred_region
      %115 = dma.done [#allocation6], 256
    $region45: #{tpu_custom_call.1} parent=1 // pred_fallthru
      _
    // Predicated region
    $region46: #{tpu_custom_call.1} parent=1 // pred_check
      _
    $region47: #{tpu_custom_call.1} parent=1 // pred_check_branch
      %117 = sbr.rel (0) target = $region49
    $region48: #{tpu_custom_call.1} parent=1 // pred_region
      %119 = dma.done [#allocation6], 2048
    $region49: #{tpu_custom_call.1} parent=1 // pred_fallthru
      _
    // Predicated region
    $region50: #{tpu_custom_call.1} parent=1 // pred_check
      _
    $region51: #{tpu_custom_call.1} parent=1 // pred_check_branch
      %121 = sbr.rel (0) target = $region53
    $region52: #{tpu_custom_call.1} parent=1 // pred_region
      %123 = dma.done [#allocation9], 32
    $region53: #{tpu_custom_call.1} parent=1 // pred_fallthru
      _
    // Predicated region
    $region54: #{tpu_custom_call.1} parent=1 // pred_check
      _
    $region55: #{tpu_custom_call.1} parent=1 // pred_check_branch
      %125 = sbr.rel (0) target = $region57
    $region56: #{tpu_custom_call.1} parent=1 // pred_region
      %127 = dma.done [#allocation9], 8192
    $region57: #{tpu_custom_call.1} parent=1 // pred_fallthru
      _
    // Predicated region
    $region58: #{tpu_custom_call.1} parent=1 // pred_check
      _
    $region59: #{tpu_custom_call.1} parent=1 // pred_check_branch
      %129 = sbr.rel (0) target = $region61
    $region60: #{tpu_custom_call.1} parent=1 // pred_region
      %131 = dma.done [#allocation12], 64
    $region61: #{tpu_custom_call.1} parent=1 // pred_fallthru
      _
    // Predicated region
    $region62: #{tpu_custom_call.1} parent=1 // pred_check
      _
    $region63: #{tpu_custom_call.1} parent=1 // pred_check_branch
      %133 = sbr.rel (0) target = $region65
    $region64: #{tpu_custom_call.1} parent=1 // pred_region
      %135 = dma.done [#allocation12], 24576
    $region65: #{tpu_custom_call.1} parent=1 // pred_fallthru
      _
    %v137 = vld [vmem:[#allocation2] sm:$0xf]
    %v138 = vld [vmem:[#allocation5] sm:$0xf]
    %v139 = vld [vmem:[#allocation5 + $0x4] sm:$0xf]
    %v140 = vld [vmem:[#allocation5 + $0x8] sm:$0xf]
    %v141 = vld [vmem:[#allocation5 + $0xc] sm:$0xf]
    %v142 = vld [vmem:[%s2] sm:$0x1]
    %v144 = vperm.slane %v142, 0
    %v150 = vunpack.c.l.b16 %v138
    %v151 = vunpack.c.l.b16 %v139
    %v152 = vunpack.c.l.b16 %v140
    %v153 = vunpack.c.l.b16 %v141
    %v154 = vpack.c.b16 %v151, %v150
    %v155 = vpack.c.b16 %v153, %v152
    %vm158 = vcmask 261120
    %v160 = vsel %vm158, %v137, 0
    %162 = vmatpush.bf16.msra.mxu0 0
    %163 = vmatpush.bf16.msra.mxu0 0
    %164 = vmatpush.bf16.msra.mxu0 0
    %165 = vmatpush.bf16.msra.mxu0 0
    %166 = vmatpush.bf16.msra.mxu0 0
    %167 = vmatpush.bf16.msra.mxu0 0
    %168 = vmatpush.bf16.msra.mxu0 %v155
    %169 = vmatpush.bf16.msra.mxu0 %v154
    %170 = vmatmul.bf16.gmra.mxu0 %v160
    %v171 = vpop.f32.mrf.mxu0
    %v172 = vadd.f32 %v144, %v171
    %v173 = vpop.f32.mrf.mxu0
    %174 = vdwg.mxu0
    %v175 = vpack.c.bf16 %v172, %v172
    %v176 = vld [vmem:[#allocation7] sm:$0xff]
    %v177 = vld [vmem:[#allocation7 + $0x8] sm:$0xff]
    %v178 = vld [vmem:[#allocation7 + $0x10] sm:$0xff]
    %v179 = vld [vmem:[#allocation7 + $0x18] sm:$0xff]
    %v180 = vld [vmem:[#allocation7 + $0x20] sm:$0xff]
    %v181 = vld [vmem:[#allocation7 + $0x28] sm:$0xff]
    %v182 = vld [vmem:[#allocation7 + $0x30] sm:$0xff]
    %v183 = vld [vmem:[#allocation7 + $0x38] sm:$0xff]
    %v184 = vld [vmem:[#allocation7 + $0x40] sm:$0xff]
    %v185 = vld [vmem:[#allocation7 + $0x48] sm:$0xff]
    %v186 = vld [vmem:[#allocation7 + $0x50] sm:$0xff]
    %v187 = vld [vmem:[#allocation7 + $0x58] sm:$0xff]
    %v188 = vld [vmem:[#allocation7 + $0x60] sm:$0xff]
    %v189 = vld [vmem:[#allocation7 + $0x68] sm:$0xff]
    %v190 = vld [vmem:[#allocation7 + $0x70] sm:$0xff]
    %v191 = vld [vmem:[#allocation7 + $0x78] sm:$0xff]
    %v192 = vld [vmem:[#allocation8] sm:$0x3]
    %v194 = vperm.slane %v192, 0
    %v195 = vperm.slane %v192, 1
    %v214 = vunpack.c.l.b16 %v176
    %v215 = vunpack.c.h.b16 %v176
    %v216 = vunpack.c.l.b16 %v177
    %v217 = vunpack.c.h.b16 %v177
    %v218 = vunpack.c.l.b16 %v178
    %v219 = vunpack.c.h.b16 %v178
    %v220 = vunpack.c.l.b16 %v179
    %v221 = vunpack.c.h.b16 %v179
    %v222 = vunpack.c.l.b16 %v180
    %v223 = vunpack.c.h.b16 %v180
    %v224 = vunpack.c.l.b16 %v181
    %v225 = vunpack.c.h.b16 %v181
    %v226 = vunpack.c.l.b16 %v182
    %v227 = vunpack.c.h.b16 %v182
    %v228 = vunpack.c.l.b16 %v183
    %v229 = vunpack.c.h.b16 %v183
    %v230 = vunpack.c.l.b16 %v184
    %v231 = vunpack.c.h.b16 %v184
    %v232 = vunpack.c.l.b16 %v185
    %v233 = vunpack.c.h.b16 %v185
    %v234 = vunpack.c.l.b16 %v186
    %v235 = vunpack.c.h.b16 %v186
    %v236 = vunpack.c.l.b16 %v187
    %v237 = vunpack.c.h.b16 %v187
    %v238 = vunpack.c.l.b16 %v188
    %v239 = vunpack.c.h.b16 %v188
    %v240 = vunpack.c.l.b16 %v189
    %v241 = vunpack.c.h.b16 %v189
    %v242 = vunpack.c.l.b16 %v190
    %v243 = vunpack.c.h.b16 %v190
    %v244 = vunpack.c.l.b16 %v191
    %v245 = vunpack.c.h.b16 %v191
    %v246 = vpack.c.b16 %v216, %v214
    %v247 = vpack.c.b16 %v217, %v215
    %v248 = vpack.c.b16 %v220, %v218
    %v249 = vpack.c.b16 %v221, %v219
    %v250 = vpack.c.b16 %v224, %v222
    %v251 = vpack.c.b16 %v225, %v223
    %v252 = vpack.c.b16 %v228, %v226
    %v253 = vpack.c.b16 %v229, %v227
    %v254 = vpack.c.b16 %v232, %v230
    %v255 = vpack.c.b16 %v233, %v231
    %v256 = vpack.c.b16 %v236, %v234
    %v257 = vpack.c.b16 %v237, %v235
    %v258 = vpack.c.b16 %v240, %v238
    %v259 = vpack.c.b16 %v241, %v239
    %v260 = vpack.c.b16 %v244, %v242
    %v261 = vpack.c.b16 %v245, %v243
    %278 = vmatpush.bf16.msra.mxu0 %v260
    %279 = vmatpush.bf16.msra.mxu0 %v258
    %280 = vmatpush.bf16.msra.mxu0 %v256
    %281 = vmatpush.bf16.msra.mxu0 %v254
    %282 = vmatpush.bf16.msra.mxu0 %v252
    %283 = vmatpush.bf16.msra.mxu0 %v250
    %284 = vmatpush.bf16.msra.mxu0 %v248
    %285 = vmatpush.bf16.msra.mxu0 %v246
    %286 = vmatmul.bf16.gmra.mxu0 %v175
    %v287 = vpop.f32.mrf.mxu0
    %v288 = vadd.f32 %v194, %v287
    %v289 = vpop.f32.mrf.mxu0
    %290 = vdwg.mxu0
    %291 = vmatpush.bf16.msra.mxu0 %v261
    %292 = vmatpush.bf16.msra.mxu0 %v259
    %293 = vmatpush.bf16.msra.mxu0 %v257
    %294 = vmatpush.bf16.msra.mxu0 %v255
    %295 = vmatpush.bf16.msra.mxu0 %v253
    %296 = vmatpush.bf16.msra.mxu0 %v251
    %297 = vmatpush.bf16.msra.mxu0 %v249
    %298 = vmatpush.bf16.msra.mxu0 %v247
    %299 = vmatmul.bf16.gmra.mxu0 %v175
    %v300 = vpop.f32.mrf.mxu0
    %v301 = vadd.f32 %v195, %v300
    %v302 = vpop.f32.mrf.mxu0
    %303 = vdwg.mxu0
    %v304 = vmin.f32 %v288, 20.0
    %v305 = vmin.f32 %v301, 20.0
    %v306 = vmul.f32 %v304, 1.442695
    %v307 = vpow.pop %v306
    %v308 = vmul.f32 %v305, 1.442695
    %v309 = vpow.pop %v308
    %v310 = vadd.f32 %v307, 1.0
    %v311 = vadd.f32 %v309, 1.0
    %v312 = vmul.f32 %v310, %v310
    %v313 = vmul.f32 %v311, %v311
    %v314 = vsub.f32 %v312, 1.0
    %v315 = vsub.f32 %v313, 1.0
    %v316 = vmul.f32 %v288, %v314
    %v317 = vmul.f32 %v301, %v315
    %v318 = vadd.f32 %v312, 1.0
    %v319 = vadd.f32 %v313, 1.0
    %v320 = vrcp.pop %v318
    %v321 = vrcp.pop %v319
    %v322 = vmul.f32 %v316, %v320
    %v323 = vmul.f32 %v317, %v321
    %v324 = vpack.c.bf16 %v322, %v322
    %v325 = vpack.c.bf16 %v323, %v323
    %v326 = vld [vmem:[#allocation10] sm:$0xff]
    %v327 = vld [vmem:[#allocation10 + $0x8] sm:$0xff]
    %v328 = vld [vmem:[#allocation10 + $0x10] sm:$0xff]
    %v329 = vld [vmem:[#allocation10 + $0x18] sm:$0xff]
    %v330 = vld [vmem:[#allocation10 + $0x20] sm:$0xff]
    %v331 = vld [vmem:[#allocation10 + $0x28] sm:$0xff]
    %v332 = vld [vmem:[#allocation10 + $0x30] sm:$0xff]
    %v333 = vld [vmem:[#allocation10 + $0x38] sm:$0xff]
    %v334 = vld [vmem:[#allocation10 + $0x40] sm:$0xff]
    %v335 = vld [vmem:[#allocation10 + $0x48] sm:$0xff]
    %v336 = vld [vmem:[#allocation10 + $0x50] sm:$0xff]
    %v337 = vld [vmem:[#allocation10 + $0x58] sm:$0xff]
    %v338 = vld [vmem:[#allocation10 + $0x60] sm:$0xff]
    %v339 = vld [vmem:[#allocation10 + $0x68] sm:$0xff]
    %v340 = vld [vmem:[#allocation10 + $0x70] sm:$0xff]
    %v341 = vld [vmem:[#allocation10 + $0x78] sm:$0xff]
    %v342 = vld [vmem:[#allocation10 + $0x80] sm:$0xff]
    %v343 = vld [vmem:[#allocation10 + $0x88] sm:$0xff]
    %v344 = vld [vmem:[#allocation10 + $0x90] sm:$0xff]
    %v345 = vld [vmem:[#allocation10 + $0x98] sm:$0xff]
    %v346 = vld [vmem:[#allocation10 + $0xa0] sm:$0xff]
    %v347 = vld [vmem:[#allocation10 + $0xa8] sm:$0xff]
    %v348 = vld [vmem:[#allocation10 + $0xb0] sm:$0xff]
    %v349 = vld [vmem:[#allocation10 + $0xb8] sm:$0xff]
    %v350 = vld [vmem:[#allocation10 + $0xc0] sm:$0xff]
    %v351 = vld [vmem:[#allocation10 + $0xc8] sm:$0xff]
    %v352 = vld [vmem:[#allocation10 + $0xd0] sm:$0xff]
    %v353 = vld [vmem:[#allocation10 + $0xd8] sm:$0xff]
    %v354 = vld [vmem:[#allocation10 + $0xe0] sm:$0xff]
    %v355 = vld [vmem:[#allocation10 + $0xe8] sm:$0xff]
    %v356 = vld [vmem:[#allocation10 + $0xf0] sm:$0xff]
    %v357 = vld [vmem:[#allocation10 + $0xf8] sm:$0xff]
    %v358 = vld [vmem:[#allocation10 + $0x100] sm:$0xff]
    %v359 = vld [vmem:[#allocation10 + $0x108] sm:$0xff]
    %v360 = vld [vmem:[#allocation10 + $0x110] sm:$0xff]
    %v361 = vld [vmem:[#allocation10 + $0x118] sm:$0xff]
    %v362 = vld [vmem:[#allocation10 + $0x120] sm:$0xff]
    %v363 = vld [vmem:[#allocation10 + $0x128] sm:$0xff]
    %v364 = vld [vmem:[#allocation10 + $0x130] sm:$0xff]
    %v365 = vld [vmem:[#allocation10 + $0x138] sm:$0xff]
    %v366 = vld [vmem:[#allocation10 + $0x140] sm:$0xff]
    %v367 = vld [vmem:[#allocation10 + $0x148] sm:$0xff]
    %v368 = vld [vmem:[#allocation10 + $0x150] sm:$0xff]
    %v369 = vld [vmem:[#allocation10 + $0x158] sm:$0xff]
    %v370 = vld [vmem:[#allocation10 + $0x160] sm:$0xff]
    %v371 = vld [vmem:[#allocation10 + $0x168] sm:$0xff]
    %v372 = vld [vmem:[#allocation10 + $0x170] sm:$0xff]
    %v373 = vld [vmem:[#allocation10 + $0x178] sm:$0xff]
    %v374 = vld [vmem:[#allocation10 + $0x180] sm:$0xff]
    %v375 = vld [vmem:[#allocation10 + $0x188] sm:$0xff]
    %v376 = vld [vmem:[#allocation10 + $0x190] sm:$0xff]
    %v377 = vld [vmem:[#allocation10 + $0x198] sm:$0xff]
    %v378 = vld [vmem:[#allocation10 + $0x1a0] sm:$0xff]
    %v379 = vld [vmem:[#allocation10 + $0x1a8] sm:$0xff]
    %v380 = vld [vmem:[#allocation10 + $0x1b0] sm:$0xff]
    %v381 = vld [vmem:[#allocation10 + $0x1b8] sm:$0xff]
    %v382 = vld [vmem:[#allocation10 + $0x1c0] sm:$0xff]
    %v383 = vld [vmem:[#allocation10 + $0x1c8] sm:$0xff]
    %v384 = vld [vmem:[#allocation10 + $0x1d0] sm:$0xff]
    %v385 = vld [vmem:[#allocation10 + $0x1d8] sm:$0xff]
    %v386 = vld [vmem:[#allocation10 + $0x1e0] sm:$0xff]
    %v387 = vld [vmem:[#allocation10 + $0x1e8] sm:$0xff]
    %v388 = vld [vmem:[#allocation10 + $0x1f0] sm:$0xff]
    %v389 = vld [vmem:[#allocation10 + $0x1f8] sm:$0xff]
    %v390 = vld [vmem:[#allocation11] sm:$0xf]
    %v392 = vperm.slane %v390, 0
    %v393 = vperm.slane %v390, 1
    %v394 = vperm.slane %v390, 2
    %v395 = vperm.slane %v390, 3
    %v464 = vunpack.c.l.b16 %v326
    %v465 = vunpack.c.h.b16 %v326
    %v466 = vunpack.c.l.b16 %v327
    %v467 = vunpack.c.h.b16 %v327
    %v468 = vunpack.c.l.b16 %v328
    %v469 = vunpack.c.h.b16 %v328
    %v470 = vunpack.c.l.b16 %v329
    %v471 = vunpack.c.h.b16 %v329
    %v472 = vunpack.c.l.b16 %v330
    %v473 = vunpack.c.h.b16 %v330
    %v474 = vunpack.c.l.b16 %v331
    %v475 = vunpack.c.h.b16 %v331
    %v476 = vunpack.c.l.b16 %v332
    %v477 = vunpack.c.h.b16 %v332
    %v478 = vunpack.c.l.b16 %v333
    %v479 = vunpack.c.h.b16 %v333
    %v480 = vunpack.c.l.b16 %v334
    %v481 = vunpack.c.h.b16 %v334
    %v482 = vunpack.c.l.b16 %v335
    %v483 = vunpack.c.h.b16 %v335
    %v484 = vunpack.c.l.b16 %v336
    %v485 = vunpack.c.h.b16 %v336
    %v486 = vunpack.c.l.b16 %v337
    %v487 = vunpack.c.h.b16 %v337
    %v488 = vunpack.c.l.b16 %v338
    %v489 = vunpack.c.h.b16 %v338
    %v490 = vunpack.c.l.b16 %v339
    %v491 = vunpack.c.h.b16 %v339
    %v492 = vunpack.c.l.b16 %v340
    %v493 = vunpack.c.h.b16 %v340
    %v494 = vunpack.c.l.b16 %v341
    %v495 = vunpack.c.h.b16 %v341
    %v496 = vunpack.c.l.b16 %v342
    %v497 = vunpack.c.h.b16 %v342
    %v498 = vunpack.c.l.b16 %v343
    %v499 = vunpack.c.h.b16 %v343
    %v500 = vunpack.c.l.b16 %v344
    %v501 = vunpack.c.h.b16 %v344
    %v502 = vunpack.c.l.b16 %v345
    %v503 = vunpack.c.h.b16 %v345
    %v504 = vunpack.c.l.b16 %v346
    %v505 = vunpack.c.h.b16 %v346
    %v506 = vunpack.c.l.b16 %v347
    %v507 = vunpack.c.h.b16 %v347
    %v508 = vunpack.c.l.b16 %v348
    %v509 = vunpack.c.h.b16 %v348
    %v510 = vunpack.c.l.b16 %v349
    %v511 = vunpack.c.h.b16 %v349
    %v512 = vunpack.c.l.b16 %v350
    %v513 = vunpack.c.h.b16 %v350
    %v514 = vunpack.c.l.b16 %v351
    %v515 = vunpack.c.h.b16 %v351
    %v516 = vunpack.c.l.b16 %v352
    %v517 = vunpack.c.h.b16 %v352
    %v518 = vunpack.c.l.b16 %v353
    %v519 = vunpack.c.h.b16 %v353
    %v520 = vunpack.c.l.b16 %v354
    %v521 = vunpack.c.h.b16 %v354
    %v522 = vunpack.c.l.b16 %v355
    %v523 = vunpack.c.h.b16 %v355
    %v524 = vunpack.c.l.b16 %v356
    %v525 = vunpack.c.h.b16 %v356
    %v526 = vunpack.c.l.b16 %v357
    %v527 = vunpack.c.h.b16 %v357
    %v528 = vunpack.c.l.b16 %v358
    %v529 = vunpack.c.h.b16 %v358
    %v530 = vunpack.c.l.b16 %v359
    %v531 = vunpack.c.h.b16 %v359
    %v532 = vunpack.c.l.b16 %v360
    %v533 = vunpack.c.h.b16 %v360
    %v534 = vunpack.c.l.b16 %v361
    %v535 = vunpack.c.h.b16 %v361
    %v536 = vunpack.c.l.b16 %v362
    %v537 = vunpack.c.h.b16 %v362
    %v538 = vunpack.c.l.b16 %v363
    %v539 = vunpack.c.h.b16 %v363
    %v540 = vunpack.c.l.b16 %v364
    %v541 = vunpack.c.h.b16 %v364
    %v542 = vunpack.c.l.b16 %v365
    %v543 = vunpack.c.h.b16 %v365
    %v544 = vunpack.c.l.b16 %v366
    %v545 = vunpack.c.h.b16 %v366
    %v546 = vunpack.c.l.b16 %v367
    %v547 = vunpack.c.h.b16 %v367
    %v548 = vunpack.c.l.b16 %v368
    %v549 = vunpack.c.h.b16 %v368
    %v550 = vunpack.c.l.b16 %v369
    %v551 = vunpack.c.h.b16 %v369
    %v552 = vunpack.c.l.b16 %v370
    %v553 = vunpack.c.h.b16 %v370
    %v554 = vunpack.c.l.b16 %v371
    %v555 = vunpack.c.h.b16 %v371
    %v556 = vunpack.c.l.b16 %v372
    %v557 = vunpack.c.h.b16 %v372
    %v558 = vunpack.c.l.b16 %v373
    %v559 = vunpack.c.h.b16 %v373
    %v560 = vunpack.c.l.b16 %v374
    %v561 = vunpack.c.h.b16 %v374
    %v562 = vunpack.c.l.b16 %v375
    %v563 = vunpack.c.h.b16 %v375
    %v564 = vunpack.c.l.b16 %v376
    %v565 = vunpack.c.h.b16 %v376
    %v566 = vunpack.c.l.b16 %v377
    %v567 = vunpack.c.h.b16 %v377
    %v568 = vunpack.c.l.b16 %v378
    %v569 = vunpack.c.h.b16 %v378
    %v570 = vunpack.c.l.b16 %v379
    %v571 = vunpack.c.h.b16 %v379
    %v572 = vunpack.c.l.b16 %v380
    %v573 = vunpack.c.h.b16 %v380
    %v574 = vunpack.c.l.b16 %v381
    %v575 = vunpack.c.h.b16 %v381
    %v576 = vunpack.c.l.b16 %v382
    %v577 = vunpack.c.h.b16 %v382
    %v578 = vunpack.c.l.b16 %v383
    %v579 = vunpack.c.h.b16 %v383
    %v580 = vunpack.c.l.b16 %v384
    %v581 = vunpack.c.h.b16 %v384
    %v582 = vunpack.c.l.b16 %v385
    %v583 = vunpack.c.h.b16 %v385
    %v584 = vunpack.c.l.b16 %v386
    %v585 = vunpack.c.h.b16 %v386
    %v586 = vunpack.c.l.b16 %v387
    %v587 = vunpack.c.h.b16 %v387
    %v588 = vunpack.c.l.b16 %v388
    %v589 = vunpack.c.h.b16 %v388
    %v590 = vunpack.c.l.b16 %v389
    %v591 = vunpack.c.h.b16 %v389
    %v592 = vpack.c.b16 %v468, %v464
    %v593 = vpack.c.b16 %v469, %v465
    %v594 = vpack.c.b16 %v470, %v466
    %v595 = vpack.c.b16 %v471, %v467
    %v596 = vpack.c.b16 %v476, %v472
    %v597 = vpack.c.b16 %v477, %v473
    %v598 = vpack.c.b16 %v478, %v474
    %v599 = vpack.c.b16 %v479, %v475
    %v600 = vpack.c.b16 %v484, %v480
    %v601 = vpack.c.b16 %v485, %v481
    %v602 = vpack.c.b16 %v486, %v482
    %v603 = vpack.c.b16 %v487, %v483
    %v604 = vpack.c.b16 %v492, %v488
    %v605 = vpack.c.b16 %v493, %v489
    %v606 = vpack.c.b16 %v494, %v490
    %v607 = vpack.c.b16 %v495, %v491
    %v608 = vpack.c.b16 %v500, %v496
    %v609 = vpack.c.b16 %v501, %v497
    %v610 = vpack.c.b16 %v502, %v498
    %v611 = vpack.c.b16 %v503, %v499
    %v612 = vpack.c.b16 %v508, %v504
    %v613 = vpack.c.b16 %v509, %v505
    %v614 = vpack.c.b16 %v510, %v506
    %v615 = vpack.c.b16 %v511, %v507
    %v616 = vpack.c.b16 %v516, %v512
    %v617 = vpack.c.b16 %v517, %v513
    %v618 = vpack.c.b16 %v518, %v514
    %v619 = vpack.c.b16 %v519, %v515
    %v620 = vpack.c.b16 %v524, %v520
    %v621 = vpack.c.b16 %v525, %v521
    %v622 = vpack.c.b16 %v526, %v522
    %v623 = vpack.c.b16 %v527, %v523
    %v624 = vpack.c.b16 %v532, %v528
    %v625 = vpack.c.b16 %v533, %v529
    %v626 = vpack.c.b16 %v534, %v530
    %v627 = vpack.c.b16 %v535, %v531
    %v628 = vpack.c.b16 %v540, %v536
    %v629 = vpack.c.b16 %v541, %v537
    %v630 = vpack.c.b16 %v542, %v538
    %v631 = vpack.c.b16 %v543, %v539
    %v632 = vpack.c.b16 %v548, %v544
    %v633 = vpack.c.b16 %v549, %v545
    %v634 = vpack.c.b16 %v550, %v546
    %v635 = vpack.c.b16 %v551, %v547
    %v636 = vpack.c.b16 %v556, %v552
    %v637 = vpack.c.b16 %v557, %v553
    %v638 = vpack.c.b16 %v558, %v554
    %v639 = vpack.c.b16 %v559, %v555
    %v640 = vpack.c.b16 %v564, %v560
    %v641 = vpack.c.b16 %v565, %v561
    %v642 = vpack.c.b16 %v566, %v562
    %v643 = vpack.c.b16 %v567, %v563
    %v644 = vpack.c.b16 %v572, %v568
    %v645 = vpack.c.b16 %v573, %v569
    %v646 = vpack.c.b16 %v574, %v570
    %v647 = vpack.c.b16 %v575, %v571
    %v648 = vpack.c.b16 %v580, %v576
    %v649 = vpack.c.b16 %v581, %v577
    %v650 = vpack.c.b16 %v582, %v578
    %v651 = vpack.c.b16 %v583, %v579
    %v652 = vpack.c.b16 %v588, %v584
    %v653 = vpack.c.b16 %v589, %v585
    %v654 = vpack.c.b16 %v590, %v586
    %v655 = vpack.c.b16 %v591, %v587
    %720 = vmatpush.bf16.msra.mxu0 %v620
    %721 = vmatpush.bf16.msra.mxu0 %v616
    %722 = vmatpush.bf16.msra.mxu0 %v612
    %723 = vmatpush.bf16.msra.mxu0 %v608
    %724 = vmatpush.bf16.msra.mxu0 %v604
    %725 = vmatpush.bf16.msra.mxu0 %v600
    %726 = vmatpush.bf16.msra.mxu0 %v596
    %727 = vmatpush.bf16.msra.mxu0 %v592
    %728 = vmatmul.bf16.gmra.mxu0 %v324
    %v729 = vpop.f32.mrf.mxu0
    %v730 = vadd.f32 %v392, %v729
    %v731 = vpop.f32.mrf.mxu0
    %732 = vdwg.mxu0
    %733 = vmatpush.bf16.msra.mxu0 %v652
    %734 = vmatpush.bf16.msra.mxu0 %v648
    %735 = vmatpush.bf16.msra.mxu0 %v644
    %736 = vmatpush.bf16.msra.mxu0 %v640
    %737 = vmatpush.bf16.msra.mxu0 %v636
    %738 = vmatpush.bf16.msra.mxu0 %v632
    %739 = vmatpush.bf16.msra.mxu0 %v628
    %740 = vmatpush.bf16.msra.mxu0 %v624
    %741 = vmatmul.bf16.gmra.mxu0 %v325
    %v742 = vpop.f32.mrf.mxu0
    %v743 = vadd.f32 %v730, %v742
    %v744 = vpop.f32.mrf.mxu0
    %745 = vdwg.mxu0
    %746 = vmatpush.bf16.msra.mxu0 %v621
    %747 = vmatpush.bf16.msra.mxu0 %v617
    %748 = vmatpush.bf16.msra.mxu0 %v613
    %749 = vmatpush.bf16.msra.mxu0 %v609
    %750 = vmatpush.bf16.msra.mxu0 %v605
    %751 = vmatpush.bf16.msra.mxu0 %v601
    %752 = vmatpush.bf16.msra.mxu0 %v597
    %753 = vmatpush.bf16.msra.mxu0 %v593
    %754 = vmatmul.bf16.gmra.mxu0 %v324
    %v755 = vpop.f32.mrf.mxu0
    %v756 = vadd.f32 %v393, %v755
    %v757 = vpop.f32.mrf.mxu0
    %758 = vdwg.mxu0
    %759 = vmatpush.bf16.msra.mxu0 %v653
    %760 = vmatpush.bf16.msra.mxu0 %v649
    %761 = vmatpush.bf16.msra.mxu0 %v645
    %762 = vmatpush.bf16.msra.mxu0 %v641
    %763 = vmatpush.bf16.msra.mxu0 %v637
    %764 = vmatpush.bf16.msra.mxu0 %v633
    %765 = vmatpush.bf16.msra.mxu0 %v629
    %766 = vmatpush.bf16.msra.mxu0 %v625
    %767 = vmatmul.bf16.gmra.mxu0 %v325
    %v768 = vpop.f32.mrf.mxu0
    %v769 = vadd.f32 %v756, %v768
    %v770 = vpop.f32.mrf.mxu0
    %771 = vdwg.mxu0
    %772 = vmatpush.bf16.msra.mxu0 %v622
    %773 = vmatpush.bf16.msra.mxu0 %v618
    %774 = vmatpush.bf16.msra.mxu0 %v614
    %775 = vmatpush.bf16.msra.mxu0 %v610
    %776 = vmatpush.bf16.msra.mxu0 %v606
    %777 = vmatpush.bf16.msra.mxu0 %v602
    %778 = vmatpush.bf16.msra.mxu0 %v598
    %779 = vmatpush.bf16.msra.mxu0 %v594
    %780 = vmatmul.bf16.gmra.mxu0 %v324
    %v781 = vpop.f32.mrf.mxu0
    %v782 = vadd.f32 %v394, %v781
    %v783 = vpop.f32.mrf.mxu0
    %784 = vdwg.mxu0
    %785 = vmatpush.bf16.msra.mxu0 %v654
    %786 = vmatpush.bf16.msra.mxu0 %v650
    %787 = vmatpush.bf16.msra.mxu0 %v646
    %788 = vmatpush.bf16.msra.mxu0 %v642
    %789 = vmatpush.bf16.msra.mxu0 %v638
    %790 = vmatpush.bf16.msra.mxu0 %v634
    %791 = vmatpush.bf16.msra.mxu0 %v630
    %792 = vmatpush.bf16.msra.mxu0 %v626
    %793 = vmatmul.bf16.gmra.mxu0 %v325
    %v794 = vpop.f32.mrf.mxu0
    %v795 = vadd.f32 %v782, %v794
    %v796 = vpop.f32.mrf.mxu0
    %797 = vdwg.mxu0
    %798 = vmatpush.bf16.msra.mxu0 %v623
    %799 = vmatpush.bf16.msra.mxu0 %v619
    %800 = vmatpush.bf16.msra.mxu0 %v615
    %801 = vmatpush.bf16.msra.mxu0 %v611
    %802 = vmatpush.bf16.msra.mxu0 %v607
    %803 = vmatpush.bf16.msra.mxu0 %v603
    %804 = vmatpush.bf16.msra.mxu0 %v599
    %805 = vmatpush.bf16.msra.mxu0 %v595
    %806 = vmatmul.bf16.gmra.mxu0 %v324
    %v807 = vpop.f32.mrf.mxu0
    %v808 = vadd.f32 %v395, %v807
    %v809 = vpop.f32.mrf.mxu0
    %810 = vdwg.mxu0
    %811 = vmatpush.bf16.msra.mxu0 %v655
    %812 = vmatpush.bf16.msra.mxu0 %v651
    %813 = vmatpush.bf16.msra.mxu0 %v647
    %814 = vmatpush.bf16.msra.mxu0 %v643
    %815 = vmatpush.bf16.msra.mxu0 %v639
    %816 = vmatpush.bf16.msra.mxu0 %v635
    %817 = vmatpush.bf16.msra.mxu0 %v631
    %818 = vmatpush.bf16.msra.mxu0 %v627
    %819 = vmatmul.bf16.gmra.mxu0 %v325
    %v820 = vpop.f32.mrf.mxu0
    %v821 = vadd.f32 %v808, %v820
    %v822 = vpop.f32.mrf.mxu0
    %823 = vdwg.mxu0
    %v824 = vmin.f32 %v743, 20.0
    %v825 = vmin.f32 %v769, 20.0
    %v826 = vmin.f32 %v795, 20.0
    %v827 = vmin.f32 %v821, 20.0
    %v828 = vmul.f32 %v824, 1.442695
    %v829 = vpow.pop %v828
    %v830 = vmul.f32 %v825, 1.442695
    %v831 = vpow.pop %v830
    %v832 = vmul.f32 %v826, 1.442695
    %v833 = vpow.pop %v832
    %v834 = vmul.f32 %v827, 1.442695
    %v835 = vpow.pop %v834
    %v836 = vadd.f32 %v829, 1.0
    %v837 = vadd.f32 %v831, 1.0
    %v838 = vadd.f32 %v833, 1.0
    %v839 = vadd.f32 %v835, 1.0
    %v840 = vmul.f32 %v836, %v836
    %v841 = vmul.f32 %v837, %v837
    %v842 = vmul.f32 %v838, %v838
    %v843 = vmul.f32 %v839, %v839
    %v844 = vsub.f32 %v840, 1.0
    %v845 = vsub.f32 %v841, 1.0
    %v846 = vsub.f32 %v842, 1.0
    %v847 = vsub.f32 %v843, 1.0
    %v848 = vmul.f32 %v743, %v844
    %v849 = vmul.f32 %v769, %v845
    %v850 = vmul.f32 %v795, %v846
    %v851 = vmul.f32 %v821, %v847
    %v852 = vadd.f32 %v840, 1.0
    %v853 = vadd.f32 %v841, 1.0
    %v854 = vadd.f32 %v842, 1.0
    %v855 = vadd.f32 %v843, 1.0
    %v856 = vrcp.pop %v852
    %v857 = vrcp.pop %v853
    %v858 = vrcp.pop %v854
    %v859 = vrcp.pop %v855
    %v860 = vmul.f32 %v848, %v856
    %v861 = vmul.f32 %v849, %v857
    %v862 = vmul.f32 %v850, %v858
    %v863 = vmul.f32 %v851, %v859
    %v864 = vpack.c.bf16 %v860, %v860
    %v865 = vpack.c.bf16 %v861, %v861
    %v866 = vpack.c.bf16 %v862, %v862
    %v867 = vpack.c.bf16 %v863, %v863
    %v868 = vld [vmem:[#allocation13] sm:$0xff]
    %v869 = vld [vmem:[#allocation13 + $0x8] sm:$0xff]
    %v870 = vld [vmem:[#allocation13 + $0x10] sm:$0xff]
    %v871 = vld [vmem:[#allocation13 + $0x18] sm:$0xff]
    %v872 = vld [vmem:[#allocation13 + $0x20] sm:$0xff]
    %v873 = vld [vmem:[#allocation13 + $0x28] sm:$0xff]
    %v874 = vld [vmem:[#allocation13 + $0x30] sm:$0xff]
    %v875 = vld [vmem:[#allocation13 + $0x38] sm:$0xff]
    %v876 = vld [vmem:[#allocation13 + $0x40] sm:$0xff]
    %v877 = vld [vmem:[#allocation13 + $0x48] sm:$0xff]
    %v878 = vld [vmem:[#allocation13 + $0x50] sm:$0xff]
    %v879 = vld [vmem:[#allocation13 + $0x58] sm:$0xff]
    %v880 = vld [vmem:[#allocation13 + $0x60] sm:$0xff]
    %v881 = vld [vmem:[#allocation13 + $0x68] sm:$0xff]
    %v882 = vld [vmem:[#allocation13 + $0x70] sm:$0xff]
    %v883 = vld [vmem:[#allocation13 + $0x78] sm:$0xff]
    %v884 = vld [vmem:[#allocation13 + $0x80] sm:$0xff]
    %v885 = vld [vmem:[#allocation13 + $0x88] sm:$0xff]
    %v886 = vld [vmem:[#allocation13 + $0x90] sm:$0xff]
    %v887 = vld [vmem:[#allocation13 + $0x98] sm:$0xff]
    %v888 = vld [vmem:[#allocation13 + $0xa0] sm:$0xff]
    %v889 = vld [vmem:[#allocation13 + $0xa8] sm:$0xff]
    %v890 = vld [vmem:[#allocation13 + $0xb0] sm:$0xff]
    %v891 = vld [vmem:[#allocation13 + $0xb8] sm:$0xff]
    %v892 = vld [vmem:[#allocation13 + $0xc0] sm:$0xff]
    %v893 = vld [vmem:[#allocation13 + $0xc8] sm:$0xff]
    %v894 = vld [vmem:[#allocation13 + $0xd0] sm:$0xff]
    %v895 = vld [vmem:[#allocation13 + $0xd8] sm:$0xff]
    %v896 = vld [vmem:[#allocation13 + $0xe0] sm:$0xff]
    %v897 = vld [vmem:[#allocation13 + $0xe8] sm:$0xff]
    %v898 = vld [vmem:[#allocation13 + $0xf0] sm:$0xff]
    %v899 = vld [vmem:[#allocation13 + $0xf8] sm:$0xff]
    %v900 = vld [vmem:[#allocation13 + $0x100] sm:$0xff]
    %v901 = vld [vmem:[#allocation13 + $0x108] sm:$0xff]
    %v902 = vld [vmem:[#allocation13 + $0x110] sm:$0xff]
    %v903 = vld [vmem:[#allocation13 + $0x118] sm:$0xff]
    %v904 = vld [vmem:[#allocation13 + $0x120] sm:$0xff]
    %v905 = vld [vmem:[#allocation13 + $0x128] sm:$0xff]
    %v906 = vld [vmem:[#allocation13 + $0x130] sm:$0xff]
    %v907 = vld [vmem:[#allocation13 + $0x138] sm:$0xff]
    %v908 = vld [vmem:[#allocation13 + $0x140] sm:$0xff]
    %v909 = vld [vmem:[#allocation13 + $0x148] sm:$0xff]
    %v910 = vld [vmem:[#allocation13 + $0x150] sm:$0xff]
    %v911 = vld [vmem:[#allocation13 + $0x158] sm:$0xff]
    %v912 = vld [vmem:[#allocation13 + $0x160] sm:$0xff]
    %v913 = vld [vmem:[#allocation13 + $0x168] sm:$0xff]
    %v914 = vld [vmem:[#allocation13 + $0x170] sm:$0xff]
    %v915 = vld [vmem:[#allocation13 + $0x178] sm:$0xff]
    %v916 = vld [vmem:[#allocation13 + $0x180] sm:$0xff]
    %v917 = vld [vmem:[#allocation13 + $0x188] sm:$0xff]
    %v918 = vld [vmem:[#allocation13 + $0x190] sm:$0xff]
    %v919 = vld [vmem:[#allocation13 + $0x198] sm:$0xff]
    %v920 = vld [vmem:[#allocation13 + $0x1a0] sm:$0xff]
    %v921 = vld [vmem:[#allocation13 + $0x1a8] sm:$0xff]
    %v922 = vld [vmem:[#allocation13 + $0x1b0] sm:$0xff]
    %v923 = vld [vmem:[#allocation13 + $0x1b8] sm:$0xff]
    %v924 = vld [vmem:[#allocation13 + $0x1c0] sm:$0xff]
    %v925 = vld [vmem:[#allocation13 + $0x1c8] sm:$0xff]
    %v926 = vld [vmem:[#allocation13 + $0x1d0] sm:$0xff]
    %v927 = vld [vmem:[#allocation13 + $0x1d8] sm:$0xff]
    %v928 = vld [vmem:[#allocation13 + $0x1e0] sm:$0xff]
    %v929 = vld [vmem:[#allocation13 + $0x1e8] sm:$0xff]
    %v930 = vld [vmem:[#allocation13 + $0x1f0] sm:$0xff]
    %v931 = vld [vmem:[#allocation13 + $0x1f8] sm:$0xff]
    %v932 = vld [vmem:[#allocation13 + $0x200] sm:$0xff]
    %v933 = vld [vmem:[#allocation13 + $0x208] sm:$0xff]
    %v934 = vld [vmem:[#allocation13 + $0x210] sm:$0xff]
    %v935 = vld [vmem:[#allocation13 + $0x218] sm:$0xff]
    %v936 = vld [vmem:[#allocation13 + $0x220] sm:$0xff]
    %v937 = vld [vmem:[#allocation13 + $0x228] sm:$0xff]
    %v938 = vld [vmem:[#allocation13 + $0x230] sm:$0xff]
    %v939 = vld [vmem:[#allocation13 + $0x238] sm:$0xff]
    %v940 = vld [vmem:[#allocation13 + $0x240] sm:$0xff]
    %v941 = vld [vmem:[#allocation13 + $0x248] sm:$0xff]
    %v942 = vld [vmem:[#allocation13 + $0x250] sm:$0xff]
    %v943 = vld [vmem:[#allocation13 + $0x258] sm:$0xff]
    %v944 = vld [vmem:[#allocation13 + $0x260] sm:$0xff]
    %v945 = vld [vmem:[#allocation13 + $0x268] sm:$0xff]
    %v946 = vld [vmem:[#allocation13 + $0x270] sm:$0xff]
    %v947 = vld [vmem:[#allocation13 + $0x278] sm:$0xff]
    %v948 = vld [vmem:[#allocation13 + $0x280] sm:$0xff]
    %v949 = vld [vmem:[#allocation13 + $0x288] sm:$0xff]
    %v950 = vld [vmem:[#allocation13 + $0x290] sm:$0xff]
    %v951 = vld [vmem:[#allocation13 + $0x298] sm:$0xff]
    %v952 = vld [vmem:[#allocation13 + $0x2a0] sm:$0xff]
    %v953 = vld [vmem:[#allocation13 + $0x2a8] sm:$0xff]
    %v954 = vld [vmem:[#allocation13 + $0x2b0] sm:$0xff]
    %v955 = vld [vmem:[#allocation13 + $0x2b8] sm:$0xff]
    %v956 = vld [vmem:[#allocation13 + $0x2c0] sm:$0xff]
    %v957 = vld [vmem:[#allocation13 + $0x2c8] sm:$0xff]
    %v958 = vld [vmem:[#allocation13 + $0x2d0] sm:$0xff]
    %v959 = vld [vmem:[#allocation13 + $0x2d8] sm:$0xff]
    %v960 = vld [vmem:[#allocation13 + $0x2e0] sm:$0xff]
    %v961 = vld [vmem:[#allocation13 + $0x2e8] sm:$0xff]
    %v962 = vld [vmem:[#allocation13 + $0x2f0] sm:$0xff]
    %v963 = vld [vmem:[#allocation13 + $0x2f8] sm:$0xff]
    %v964 = vld [vmem:[#allocation13 + $0x300] sm:$0xff]
    %v965 = vld [vmem:[#allocation13 + $0x308] sm:$0xff]
    %v966 = vld [vmem:[#allocation13 + $0x310] sm:$0xff]
    %v967 = vld [vmem:[#allocation13 + $0x318] sm:$0xff]
    %v968 = vld [vmem:[#allocation13 + $0x320] sm:$0xff]
    %v969 = vld [vmem:[#allocation13 + $0x328] sm:$0xff]
    %v970 = vld [vmem:[#allocation13 + $0x330] sm:$0xff]
    %v971 = vld [vmem:[#allocation13 + $0x338] sm:$0xff]
    %v972 = vld [vmem:[#allocation13 + $0x340] sm:$0xff]
    %v973 = vld [vmem:[#allocation13 + $0x348] sm:$0xff]
    %v974 = vld [vmem:[#allocation13 + $0x350] sm:$0xff]
    %v975 = vld [vmem:[#allocation13 + $0x358] sm:$0xff]
    %v976 = vld [vmem:[#allocation13 + $0x360] sm:$0xff]
    %v977 = vld [vmem:[#allocation13 + $0x368] sm:$0xff]
    %v978 = vld [vmem:[#allocation13 + $0x370] sm:$0xff]
    %v979 = vld [vmem:[#allocation13 + $0x378] sm:$0xff]
    %v980 = vld [vmem:[#allocation13 + $0x380] sm:$0xff]
    %v981 = vld [vmem:[#allocation13 + $0x388] sm:$0xff]
    %v982 = vld [vmem:[#allocation13 + $0x390] sm:$0xff]
    %v983 = vld [vmem:[#allocation13 + $0x398] sm:$0xff]
    %v984 = vld [vmem:[#allocation13 + $0x3a0] sm:$0xff]
    %v985 = vld [vmem:[#allocation13 + $0x3a8] sm:$0xff]
    %v986 = vld [vmem:[#allocation13 + $0x3b0] sm:$0xff]
    %v987 = vld [vmem:[#allocation13 + $0x3b8] sm:$0xff]
    %v988 = vld [vmem:[#allocation13 + $0x3c0] sm:$0xff]
    %v989 = vld [vmem:[#allocation13 + $0x3c8] sm:$0xff]
    %v990 = vld [vmem:[#allocation13 + $0x3d0] sm:$0xff]
    %v991 = vld [vmem:[#allocation13 + $0x3d8] sm:$0xff]
    %v992 = vld [vmem:[#allocation13 + $0x3e0] sm:$0xff]
    %v993 = vld [vmem:[#allocation13 + $0x3e8] sm:$0xff]
    %v994 = vld [vmem:[#allocation13 + $0x3f0] sm:$0xff]
    %v995 = vld [vmem:[#allocation13 + $0x3f8] sm:$0xff]
    %v996 = vld [vmem:[#allocation13 + $0x400] sm:$0xff]
    %v997 = vld [vmem:[#allocation13 + $0x408] sm:$0xff]
    %v998 = vld [vmem:[#allocation13 + $0x410] sm:$0xff]
    %v999 = vld [vmem:[#allocation13 + $0x418] sm:$0xff]
    %v1000 = vld [vmem:[#allocation13 + $0x420] sm:$0xff]
    %v1001 = vld [vmem:[#allocation13 + $0x428] sm:$0xff]
    %v1002 = vld [vmem:[#allocation13 + $0x430] sm:$0xff]
    %v1003 = vld [vmem:[#allocation13 + $0x438] sm:$0xff]
    %v1004 = vld [vmem:[#allocation13 + $0x440] sm:$0xff]
    %v1005 = vld [vmem:[#allocation13 + $0x448] sm:$0xff]
    %v1006 = vld [vmem:[#allocation13 + $0x450] sm:$0xff]
    %v1007 = vld [vmem:[#allocation13 + $0x458] sm:$0xff]
    %v1008 = vld [vmem:[#allocation13 + $0x460] sm:$0xff]
    %v1009 = vld [vmem:[#allocation13 + $0x468] sm:$0xff]
    %v1010 = vld [vmem:[#allocation13 + $0x470] sm:$0xff]
    %v1011 = vld [vmem:[#allocation13 + $0x478] sm:$0xff]
    %v1012 = vld [vmem:[#allocation13 + $0x480] sm:$0xff]
    %v1013 = vld [vmem:[#allocation13 + $0x488] sm:$0xff]
    %v1014 = vld [vmem:[#allocation13 + $0x490] sm:$0xff]
    %v1015 = vld [vmem:[#allocation13 + $0x498] sm:$0xff]
    %v1016 = vld [vmem:[#allocation13 + $0x4a0] sm:$0xff]
    %v1017 = vld [vmem:[#allocation13 + $0x4a8] sm:$0xff]
    %v1018 = vld [vmem:[#allocation13 + $0x4b0] sm:$0xff]
    %v1019 = vld [vmem:[#allocation13 + $0x4b8] sm:$0xff]
    %v1020 = vld [vmem:[#allocation13 + $0x4c0] sm:$0xff]
    %v1021 = vld [vmem:[#allocation13 + $0x4c8] sm:$0xff]
    %v1022 = vld [vmem:[#allocation13 + $0x4d0] sm:$0xff]
    %v1023 = vld [vmem:[#allocation13 + $0x4d8] sm:$0xff]
    %v1024 = vld [vmem:[#allocation13 + $0x4e0] sm:$0xff]
    %v1025 = vld [vmem:[#allocation13 + $0x4e8] sm:$0xff]
    %v1026 = vld [vmem:[#allocation13 + $0x4f0] sm:$0xff]
    %v1027 = vld [vmem:[#allocation13 + $0x4f8] sm:$0xff]
    %v1028 = vld [vmem:[#allocation13 + $0x500] sm:$0xff]
    %v1029 = vld [vmem:[#allocation13 + $0x508] sm:$0xff]
    %v1030 = vld [vmem:[#allocation13 + $0x510] sm:$0xff]
    %v1031 = vld [vmem:[#allocation13 + $0x518] sm:$0xff]
    %v1032 = vld [vmem:[#allocation13 + $0x520] sm:$0xff]
    %v1033 = vld [vmem:[#allocation13 + $0x528] sm:$0xff]
    %v1034 = vld [vmem:[#allocation13 + $0x530] sm:$0xff]
    %v1035 = vld [vmem:[#allocation13 + $0x538] sm:$0xff]
    %v1036 = vld [vmem:[#allocation13 + $0x540] sm:$0xff]
    %v1037 = vld [vmem:[#allocation13 + $0x548] sm:$0xff]
    %v1038 = vld [vmem:[#allocation13 + $0x550] sm:$0xff]
    %v1039 = vld [vmem:[#allocation13 + $0x558] sm:$0xff]
    %v1040 = vld [vmem:[#allocation13 + $0x560] sm:$0xff]
    %v1041 = vld [vmem:[#allocation13 + $0x568] sm:$0xff]
    %v1042 = vld [vmem:[#allocation13 + $0x570] sm:$0xff]
    %v1043 = vld [vmem:[#allocation13 + $0x578] sm:$0xff]
    %v1044 = vld [vmem:[#allocation13 + $0x580] sm:$0xff]
    %v1045 = vld [vmem:[#allocation13 + $0x588] sm:$0xff]
    %v1046 = vld [vmem:[#allocation13 + $0x590] sm:$0xff]
    %v1047 = vld [vmem:[#allocation13 + $0x598] sm:$0xff]
    %v1048 = vld [vmem:[#allocation13 + $0x5a0] sm:$0xff]
    %v1049 = vld [vmem:[#allocation13 + $0x5a8] sm:$0xff]
    %v1050 = vld [vmem:[#allocation13 + $0x5b0] sm:$0xff]
    %v1051 = vld [vmem:[#allocation13 + $0x5b8] sm:$0xff]
    %v1052 = vld [vmem:[#allocation13 + $0x5c0] sm:$0xff]
    %v1053 = vld [vmem:[#allocation13 + $0x5c8] sm:$0xff]
    %v1054 = vld [vmem:[#allocation13 + $0x5d0] sm:$0xff]
    %v1055 = vld [vmem:[#allocation13 + $0x5d8] sm:$0xff]
    %v1056 = vld [vmem:[#allocation13 + $0x5e0] sm:$0xff]
    %v1057 = vld [vmem:[#allocation13 + $0x5e8] sm:$0xff]
    %v1058 = vld [vmem:[#allocation13 + $0x5f0] sm:$0xff]
    %v1059 = vld [vmem:[#allocation13 + $0x5f8] sm:$0xff]
    %v1060 = vld [vmem:[%s8] sm:$0x3f]
    %v1062 = vperm.slane %v1060, 0
    %v1063 = vperm.slane %v1060, 1
    %v1064 = vperm.slane %v1060, 2
    %v1065 = vperm.slane %v1060, 3
    %v1066 = vperm.slane %v1060, 4
    %v1067 = vperm.slane %v1060, 5
    %v1266 = vunpack.c.l.b16 %v868
    %v1267 = vunpack.c.h.b16 %v868
    %v1268 = vunpack.c.l.b16 %v869
    %v1269 = vunpack.c.h.b16 %v869
    %v1270 = vunpack.c.l.b16 %v870
    %v1271 = vunpack.c.h.b16 %v870
    %v1272 = vunpack.c.l.b16 %v871
    %v1273 = vunpack.c.h.b16 %v871
    %v1274 = vunpack.c.l.b16 %v872
    %v1275 = vunpack.c.h.b16 %v872
    %v1276 = vunpack.c.l.b16 %v873
    %v1277 = vunpack.c.h.b16 %v873
    %v1278 = vunpack.c.l.b16 %v874
    %v1279 = vunpack.c.h.b16 %v874
    %v1280 = vunpack.c.l.b16 %v875
    %v1281 = vunpack.c.h.b16 %v875
    %v1282 = vunpack.c.l.b16 %v876
    %v1283 = vunpack.c.h.b16 %v876
    %v1284 = vunpack.c.l.b16 %v877
    %v1285 = vunpack.c.h.b16 %v877
    %v1286 = vunpack.c.l.b16 %v878
    %v1287 = vunpack.c.h.b16 %v878
    %v1288 = vunpack.c.l.b16 %v879
    %v1289 = vunpack.c.h.b16 %v879
    %v1290 = vunpack.c.l.b16 %v880
    %v1291 = vunpack.c.h.b16 %v880
    %v1292 = vunpack.c.l.b16 %v881
    %v1293 = vunpack.c.h.b16 %v881
    %v1294 = vunpack.c.l.b16 %v882
    %v1295 = vunpack.c.h.b16 %v882
    %v1296 = vunpack.c.l.b16 %v883
    %v1297 = vunpack.c.h.b16 %v883
    %v1298 = vunpack.c.l.b16 %v884
    %v1299 = vunpack.c.h.b16 %v884
    %v1300 = vunpack.c.l.b16 %v885
    %v1301 = vunpack.c.h.b16 %v885
    %v1302 = vunpack.c.l.b16 %v886
    %v1303 = vunpack.c.h.b16 %v886
    %v1304 = vunpack.c.l.b16 %v887
    %v1305 = vunpack.c.h.b16 %v887
    %v1306 = vunpack.c.l.b16 %v888
    %v1307 = vunpack.c.h.b16 %v888
    %v1308 = vunpack.c.l.b16 %v889
    %v1309 = vunpack.c.h.b16 %v889
    %v1310 = vunpack.c.l.b16 %v890
    %v1311 = vunpack.c.h.b16 %v890
    %v1312 = vunpack.c.l.b16 %v891
    %v1313 = vunpack.c.h.b16 %v891
    %v1314 = vunpack.c.l.b16 %v892
    %v1315 = vunpack.c.h.b16 %v892
    %v1316 = vunpack.c.l.b16 %v893
    %v1317 = vunpack.c.h.b16 %v893
    %v1318 = vunpack.c.l.b16 %v894
    %v1319 = vunpack.c.h.b16 %v894
    %v1320 = vunpack.c.l.b16 %v895
    %v1321 = vunpack.c.h.b16 %v895
    %v1322 = vunpack.c.l.b16 %v896
    %v1323 = vunpack.c.h.b16 %v896
    %v1324 = vunpack.c.l.b16 %v897
    %v1325 = vunpack.c.h.b16 %v897
    %v1326 = vunpack.c.l.b16 %v898
    %v1327 = vunpack.c.h.b16 %v898
    %v1328 = vunpack.c.l.b16 %v899
    %v1329 = vunpack.c.h.b16 %v899
    %v1330 = vunpack.c.l.b16 %v900
    %v1331 = vunpack.c.h.b16 %v900
    %v1332 = vunpack.c.l.b16 %v901
    %v1333 = vunpack.c.h.b16 %v901
    %v1334 = vunpack.c.l.b16 %v902
    %v1335 = vunpack.c.h.b16 %v902
    %v1336 = vunpack.c.l.b16 %v903
    %v1337 = vunpack.c.h.b16 %v903
    %v1338 = vunpack.c.l.b16 %v904
    %v1339 = vunpack.c.h.b16 %v904
    %v1340 = vunpack.c.l.b16 %v905
    %v1341 = vunpack.c.h.b16 %v905
    %v1342 = vunpack.c.l.b16 %v906
    %v1343 = vunpack.c.h.b16 %v906
    %v1344 = vunpack.c.l.b16 %v907
    %v1345 = vunpack.c.h.b16 %v907
    %v1346 = vunpack.c.l.b16 %v908
    %v1347 = vunpack.c.h.b16 %v908
    %v1348 = vunpack.c.l.b16 %v909
    %v1349 = vunpack.c.h.b16 %v909
    %v1350 = vunpack.c.l.b16 %v910
    %v1351 = vunpack.c.h.b16 %v910
    %v1352 = vunpack.c.l.b16 %v911
    %v1353 = vunpack.c.h.b16 %v911
    %v1354 = vunpack.c.l.b16 %v912
    %v1355 = vunpack.c.h.b16 %v912
    %v1356 = vunpack.c.l.b16 %v913
    %v1357 = vunpack.c.h.b16 %v913
    %v1358 = vunpack.c.l.b16 %v914
    %v1359 = vunpack.c.h.b16 %v914
    %v1360 = vunpack.c.l.b16 %v915
    %v1361 = vunpack.c.h.b16 %v915
    %v1362 = vunpack.c.l.b16 %v916
    %v1363 = vunpack.c.h.b16 %v916
    %v1364 = vunpack.c.l.b16 %v917
    %v1365 = vunpack.c.h.b16 %v917
    %v1366 = vunpack.c.l.b16 %v918
    %v1367 = vunpack.c.h.b16 %v918
    %v1368 = vunpack.c.l.b16 %v919
    %v1369 = vunpack.c.h.b16 %v919
    %v1370 = vunpack.c.l.b16 %v920
    %v1371 = vunpack.c.h.b16 %v920
    %v1372 = vunpack.c.l.b16 %v921
    %v1373 = vunpack.c.h.b16 %v921
    %v1374 = vunpack.c.l.b16 %v922
    %v1375 = vunpack.c.h.b16 %v922
    %v1376 = vunpack.c.l.b16 %v923
    %v1377 = vunpack.c.h.b16 %v923
    %v1378 = vunpack.c.l.b16 %v924
    %v1379 = vunpack.c.h.b16 %v924
    %v1380 = vunpack.c.l.b16 %v925
    %v1381 = vunpack.c.h.b16 %v925
    %v1382 = vunpack.c.l.b16 %v926
    %v1383 = vunpack.c.h.b16 %v926
    %v1384 = vunpack.c.l.b16 %v927
    %v1385 = vunpack.c.h.b16 %v927
    %v1386 = vunpack.c.l.b16 %v928
    %v1387 = vunpack.c.h.b16 %v928
    %v1388 = vunpack.c.l.b16 %v929
    %v1389 = vunpack.c.h.b16 %v929
    %v1390 = vunpack.c.l.b16 %v930
    %v1391 = vunpack.c.h.b16 %v930
    %v1392 = vunpack.c.l.b16 %v931
    %v1393 = vunpack.c.h.b16 %v931
    %v1394 = vunpack.c.l.b16 %v932
    %v1395 = vunpack.c.h.b16 %v932
    %v1396 = vunpack.c.l.b16 %v933
    %v1397 = vunpack.c.h.b16 %v933
    %v1398 = vunpack.c.l.b16 %v934
    %v1399 = vunpack.c.h.b16 %v934
    %v1400 = vunpack.c.l.b16 %v935
    %v1401 = vunpack.c.h.b16 %v935
    %v1402 = vunpack.c.l.b16 %v936
    %v1403 = vunpack.c.h.b16 %v936
    %v1404 = vunpack.c.l.b16 %v937
    %v1405 = vunpack.c.h.b16 %v937
    %v1406 = vunpack.c.l.b16 %v938
    %v1407 = vunpack.c.h.b16 %v938
    %v1408 = vunpack.c.l.b16 %v939
    %v1409 = vunpack.c.h.b16 %v939
    %v1410 = vunpack.c.l.b16 %v940
    %v1411 = vunpack.c.h.b16 %v940
    %v1412 = vunpack.c.l.b16 %v941
    %v1413 = vunpack.c.h.b16 %v941
    %v1414 = vunpack.c.l.b16 %v942
    %v1415 = vunpack.c.h.b16 %v942
    %v1416 = vunpack.c.l.b16 %v943
    %v1417 = vunpack.c.h.b16 %v943
    %v1418 = vunpack.c.l.b16 %v944
    %v1419 = vunpack.c.h.b16 %v944
    %v1420 = vunpack.c.l.b16 %v945
    %v1421 = vunpack.c.h.b16 %v945
    %v1422 = vunpack.c.l.b16 %v946
    %v1423 = vunpack.c.h.b16 %v946
    %v1424 = vunpack.c.l.b16 %v947
    %v1425 = vunpack.c.h.b16 %v947
    %v1426 = vunpack.c.l.b16 %v948
    %v1427 = vunpack.c.h.b16 %v948
    %v1428 = vunpack.c.l.b16 %v949
    %v1429 = vunpack.c.h.b16 %v949
    %v1430 = vunpack.c.l.b16 %v950
    %v1431 = vunpack.c.h.b16 %v950
    %v1432 = vunpack.c.l.b16 %v951
    %v1433 = vunpack.c.h.b16 %v951
    %v1434 = vunpack.c.l.b16 %v952
    %v1435 = vunpack.c.h.b16 %v952
    %v1436 = vunpack.c.l.b16 %v953
    %v1437 = vunpack.c.h.b16 %v953
    %v1438 = vunpack.c.l.b16 %v954
    %v1439 = vunpack.c.h.b16 %v954
    %v1440 = vunpack.c.l.b16 %v955
    %v1441 = vunpack.c.h.b16 %v955
    %v1442 = vunpack.c.l.b16 %v956
    %v1443 = vunpack.c.h.b16 %v956
    %v1444 = vunpack.c.l.b16 %v957
    %v1445 = vunpack.c.h.b16 %v957
    %v1446 = vunpack.c.l.b16 %v958
    %v1447 = vunpack.c.h.b16 %v958
    %v1448 = vunpack.c.l.b16 %v959
    %v1449 = vunpack.c.h.b16 %v959
    %v1450 = vunpack.c.l.b16 %v960
    %v1451 = vunpack.c.h.b16 %v960
    %v1452 = vunpack.c.l.b16 %v961
    %v1453 = vunpack.c.h.b16 %v961
    %v1454 = vunpack.c.l.b16 %v962
    %v1455 = vunpack.c.h.b16 %v962
    %v1456 = vunpack.c.l.b16 %v963
    %v1457 = vunpack.c.h.b16 %v963
    %v1458 = vunpack.c.l.b16 %v964
    %v1459 = vunpack.c.h.b16 %v964
    %v1460 = vunpack.c.l.b16 %v965
    %v1461 = vunpack.c.h.b16 %v965
    %v1462 = vunpack.c.l.b16 %v966
    %v1463 = vunpack.c.h.b16 %v966
    %v1464 = vunpack.c.l.b16 %v967
    %v1465 = vunpack.c.h.b16 %v967
    %v1466 = vunpack.c.l.b16 %v968
    %v1467 = vunpack.c.h.b16 %v968
    %v1468 = vunpack.c.l.b16 %v969
    %v1469 = vunpack.c.h.b16 %v969
    %v1470 = vunpack.c.l.b16 %v970
    %v1471 = vunpack.c.h.b16 %v970
    %v1472 = vunpack.c.l.b16 %v971
    %v1473 = vunpack.c.h.b16 %v971
    %v1474 = vunpack.c.l.b16 %v972
    %v1475 = vunpack.c.h.b16 %v972
    %v1476 = vunpack.c.l.b16 %v973
    %v1477 = vunpack.c.h.b16 %v973
    %v1478 = vunpack.c.l.b16 %v974
    %v1479 = vunpack.c.h.b16 %v974
    %v1480 = vunpack.c.l.b16 %v975
    %v1481 = vunpack.c.h.b16 %v975
    %v1482 = vunpack.c.l.b16 %v976
    %v1483 = vunpack.c.h.b16 %v976
    %v1484 = vunpack.c.l.b16 %v977
    %v1485 = vunpack.c.h.b16 %v977
    %v1486 = vunpack.c.l.b16 %v978
    %v1487 = vunpack.c.h.b16 %v978
    %v1488 = vunpack.c.l.b16 %v979
    %v1489 = vunpack.c.h.b16 %v979
    %v1490 = vunpack.c.l.b16 %v980
    %v1491 = vunpack.c.h.b16 %v980
    %v1492 = vunpack.c.l.b16 %v981
    %v1493 = vunpack.c.h.b16 %v981
    %v1494 = vunpack.c.l.b16 %v982
    %v1495 = vunpack.c.h.b16 %v982
    %v1496 = vunpack.c.l.b16 %v983
    %v1497 = vunpack.c.h.b16 %v983
    %v1498 = vunpack.c.l.b16 %v984
    %v1499 = vunpack.c.h.b16 %v984
    %v1500 = vunpack.c.l.b16 %v985
    %v1501 = vunpack.c.h.b16 %v985
    %v1502 = vunpack.c.l.b16 %v986
    %v1503 = vunpack.c.h.b16 %v986
    %v1504 = vunpack.c.l.b16 %v987
    %v1505 = vunpack.c.h.b16 %v987
    %v1506 = vunpack.c.l.b16 %v988
    %v1507 = vunpack.c.h.b16 %v988
    %v1508 = vunpack.c.l.b16 %v989
    %v1509 = vunpack.c.h.b16 %v989
    %v1510 = vunpack.c.l.b16 %v990
    %v1511 = vunpack.c.h.b16 %v990
    %v1512 = vunpack.c.l.b16 %v991
    %v1513 = vunpack.c.h.b16 %v991
    %v1514 = vunpack.c.l.b16 %v992
    %v1515 = vunpack.c.h.b16 %v992
    %v1516 = vunpack.c.l.b16 %v993
    %v1517 = vunpack.c.h.b16 %v993
    %v1518 = vunpack.c.l.b16 %v994
    %v1519 = vunpack.c.h.b16 %v994
    %v1520 = vunpack.c.l.b16 %v995
    %v1521 = vunpack.c.h.b16 %v995
    %v1522 = vunpack.c.l.b16 %v996
    %v1523 = vunpack.c.h.b16 %v996
    %v1524 = vunpack.c.l.b16 %v997
    %v1525 = vunpack.c.h.b16 %v997
    %v1526 = vunpack.c.l.b16 %v998
    %v1527 = vunpack.c.h.b16 %v998
    %v1528 = vunpack.c.l.b16 %v999
    %v1529 = vunpack.c.h.b16 %v999
    %v1530 = vunpack.c.l.b16 %v1000
    %v1531 = vunpack.c.h.b16 %v1000
    %v1532 = vunpack.c.l.b16 %v1001
    %v1533 = vunpack.c.h.b16 %v1001
    %v1534 = vunpack.c.l.b16 %v1002
    %v1535 = vunpack.c.h.b16 %v1002
    %v1536 = vunpack.c.l.b16 %v1003
    %v1537 = vunpack.c.h.b16 %v1003
    %v1538 = vunpack.c.l.b16 %v1004
    %v1539 = vunpack.c.h.b16 %v1004
    %v1540 = vunpack.c.l.b16 %v1005
    %v1541 = vunpack.c.h.b16 %v1005
    %v1542 = vunpack.c.l.b16 %v1006
    %v1543 = vunpack.c.h.b16 %v1006
    %v1544 = vunpack.c.l.b16 %v1007
    %v1545 = vunpack.c.h.b16 %v1007
    %v1546 = vunpack.c.l.b16 %v1008
    %v1547 = vunpack.c.h.b16 %v1008
    %v1548 = vunpack.c.l.b16 %v1009
    %v1549 = vunpack.c.h.b16 %v1009
    %v1550 = vunpack.c.l.b16 %v1010
    %v1551 = vunpack.c.h.b16 %v1010
    %v1552 = vunpack.c.l.b16 %v1011
    %v1553 = vunpack.c.h.b16 %v1011
    %v1554 = vunpack.c.l.b16 %v1012
    %v1555 = vunpack.c.h.b16 %v1012
    %v1556 = vunpack.c.l.b16 %v1013
    %v1557 = vunpack.c.h.b16 %v1013
    %v1558 = vunpack.c.l.b16 %v1014
    %v1559 = vunpack.c.h.b16 %v1014
    %v1560 = vunpack.c.l.b16 %v1015
    %v1561 = vunpack.c.h.b16 %v1015
    %v1562 = vunpack.c.l.b16 %v1016
    %v1563 = vunpack.c.h.b16 %v1016
    %v1564 = vunpack.c.l.b16 %v1017
    %v1565 = vunpack.c.h.b16 %v1017
    %v1566 = vunpack.c.l.b16 %v1018
    %v1567 = vunpack.c.h.b16 %v1018
    %v1568 = vunpack.c.l.b16 %v1019
    %v1569 = vunpack.c.h.b16 %v1019
    %v1570 = vunpack.c.l.b16 %v1020
    %v1571 = vunpack.c.h.b16 %v1020
    %v1572 = vunpack.c.l.b16 %v1021
    %v1573 = vunpack.c.h.b16 %v1021
    %v1574 = vunpack.c.l.b16 %v1022
    %v1575 = vunpack.c.h.b16 %v1022
    %v1576 = vunpack.c.l.b16 %v1023
    %v1577 = vunpack.c.h.b16 %v1023
    %v1578 = vunpack.c.l.b16 %v1024
    %v1579 = vunpack.c.h.b16 %v1024
    %v1580 = vunpack.c.l.b16 %v1025
    %v1581 = vunpack.c.h.b16 %v1025
    %v1582 = vunpack.c.l.b16 %v1026
    %v1583 = vunpack.c.h.b16 %v1026
    %v1584 = vunpack.c.l.b16 %v1027
    %v1585 = vunpack.c.h.b16 %v1027
    %v1586 = vunpack.c.l.b16 %v1028
    %v1587 = vunpack.c.h.b16 %v1028
    %v1588 = vunpack.c.l.b16 %v1029
    %v1589 = vunpack.c.h.b16 %v1029
    %v1590 = vunpack.c.l.b16 %v1030
    %v1591 = vunpack.c.h.b16 %v1030
    %v1592 = vunpack.c.l.b16 %v1031
    %v1593 = vunpack.c.h.b16 %v1031
    %v1594 = vunpack.c.l.b16 %v1032
    %v1595 = vunpack.c.h.b16 %v1032
    %v1596 = vunpack.c.l.b16 %v1033
    %v1597 = vunpack.c.h.b16 %v1033
    %v1598 = vunpack.c.l.b16 %v1034
    %v1599 = vunpack.c.h.b16 %v1034
    %v1600 = vunpack.c.l.b16 %v1035
    %v1601 = vunpack.c.h.b16 %v1035
    %v1602 = vunpack.c.l.b16 %v1036
    %v1603 = vunpack.c.h.b16 %v1036
    %v1604 = vunpack.c.l.b16 %v1037
    %v1605 = vunpack.c.h.b16 %v1037
    %v1606 = vunpack.c.l.b16 %v1038
    %v1607 = vunpack.c.h.b16 %v1038
    %v1608 = vunpack.c.l.b16 %v1039
    %v1609 = vunpack.c.h.b16 %v1039
    %v1610 = vunpack.c.l.b16 %v1040
    %v1611 = vunpack.c.h.b16 %v1040
    %v1612 = vunpack.c.l.b16 %v1041
    %v1613 = vunpack.c.h.b16 %v1041
    %v1614 = vunpack.c.l.b16 %v1042
    %v1615 = vunpack.c.h.b16 %v1042
    %v1616 = vunpack.c.l.b16 %v1043
    %v1617 = vunpack.c.h.b16 %v1043
    %v1618 = vunpack.c.l.b16 %v1044
    %v1619 = vunpack.c.h.b16 %v1044
    %v1620 = vunpack.c.l.b16 %v1045
    %v1621 = vunpack.c.h.b16 %v1045
    %v1622 = vunpack.c.l.b16 %v1046
    %v1623 = vunpack.c.h.b16 %v1046
    %v1624 = vunpack.c.l.b16 %v1047
    %v1625 = vunpack.c.h.b16 %v1047
    %v1626 = vunpack.c.l.b16 %v1048
    %v1627 = vunpack.c.h.b16 %v1048
    %v1628 = vunpack.c.l.b16 %v1049
    %v1629 = vunpack.c.h.b16 %v1049
    %v1630 = vunpack.c.l.b16 %v1050
    %v1631 = vunpack.c.h.b16 %v1050
    %v1632 = vunpack.c.l.b16 %v1051
    %v1633 = vunpack.c.h.b16 %v1051
    %v1634 = vunpack.c.l.b16 %v1052
    %v1635 = vunpack.c.h.b16 %v1052
    %v1636 = vunpack.c.l.b16 %v1053
    %v1637 = vunpack.c.h.b16 %v1053
    %v1638 = vunpack.c.l.b16 %v1054
    %v1639 = vunpack.c.h.b16 %v1054
    %v1640 = vunpack.c.l.b16 %v1055
    %v1641 = vunpack.c.h.b16 %v1055
    %v1642 = vunpack.c.l.b16 %v1056
    %v1643 = vunpack.c.h.b16 %v1056
    %v1644 = vunpack.c.l.b16 %v1057
    %v1645 = vunpack.c.h.b16 %v1057
    %v1646 = vunpack.c.l.b16 %v1058
    %v1647 = vunpack.c.h.b16 %v1058
    %v1648 = vunpack.c.l.b16 %v1059
    %v1649 = vunpack.c.h.b16 %v1059
    %v1650 = vpack.c.b16 %v1272, %v1266
    %v1651 = vpack.c.b16 %v1273, %v1267
    %v1652 = vpack.c.b16 %v1274, %v1268
    %v1653 = vpack.c.b16 %v1275, %v1269
    %v1654 = vpack.c.b16 %v1276, %v1270
    %v1655 = vpack.c.b16 %v1277, %v1271
    %v1656 = vpack.c.b16 %v1284, %v1278
    %v1657 = vpack.c.b16 %v1285, %v1279
    %v1658 = vpack.c.b16 %v1286, %v1280
    %v1659 = vpack.c.b16 %v1287, %v1281
    %v1660 = vpack.c.b16 %v1288, %v1282
    %v1661 = vpack.c.b16 %v1289, %v1283
    %v1662 = vpack.c.b16 %v1296, %v1290
    %v1663 = vpack.c.b16 %v1297, %v1291
    %v1664 = vpack.c.b16 %v1298, %v1292
    %v1665 = vpack.c.b16 %v1299, %v1293
    %v1666 = vpack.c.b16 %v1300, %v1294
    %v1667 = vpack.c.b16 %v1301, %v1295
    %v1668 = vpack.c.b16 %v1308, %v1302
    %v1669 = vpack.c.b16 %v1309, %v1303
    %v1670 = vpack.c.b16 %v1310, %v1304
    %v1671 = vpack.c.b16 %v1311, %v1305
    %v1672 = vpack.c.b16 %v1312, %v1306
    %v1673 = vpack.c.b16 %v1313, %v1307
    %v1674 = vpack.c.b16 %v1320, %v1314
    %v1675 = vpack.c.b16 %v1321, %v1315
    %v1676 = vpack.c.b16 %v1322, %v1316
    %v1677 = vpack.c.b16 %v1323, %v1317
    %v1678 = vpack.c.b16 %v1324, %v1318
    %v1679 = vpack.c.b16 %v1325, %v1319
    %v1680 = vpack.c.b16 %v1332, %v1326
    %v1681 = vpack.c.b16 %v1333, %v1327
    %v1682 = vpack.c.b16 %v1334, %v1328
    %v1683 = vpack.c.b16 %v1335, %v1329
    %v1684 = vpack.c.b16 %v1336, %v1330
    %v1685 = vpack.c.b16 %v1337, %v1331
    %v1686 = vpack.c.b16 %v1344, %v1338
    %v1687 = vpack.c.b16 %v1345, %v1339
    %v1688 = vpack.c.b16 %v1346, %v1340
    %v1689 = vpack.c.b16 %v1347, %v1341
    %v1690 = vpack.c.b16 %v1348, %v1342
    %v1691 = vpack.c.b16 %v1349, %v1343
    %v1692 = vpack.c.b16 %v1356, %v1350
    %v1693 = vpack.c.b16 %v1357, %v1351
    %v1694 = vpack.c.b16 %v1358, %v1352
    %v1695 = vpack.c.b16 %v1359, %v1353
    %v1696 = vpack.c.b16 %v1360, %v1354
    %v1697 = vpack.c.b16 %v1361, %v1355
    %v1698 = vpack.c.b16 %v1368, %v1362
    %v1699 = vpack.c.b16 %v1369, %v1363
    %v1700 = vpack.c.b16 %v1370, %v1364
    %v1701 = vpack.c.b16 %v1371, %v1365
    %v1702 = vpack.c.b16 %v1372, %v1366
    %v1703 = vpack.c.b16 %v1373, %v1367
    %v1704 = vpack.c.b16 %v1380, %v1374
    %v1705 = vpack.c.b16 %v1381, %v1375
    %v1706 = vpack.c.b16 %v1382, %v1376
    %v1707 = vpack.c.b16 %v1383, %v1377
    %v1708 = vpack.c.b16 %v1384, %v1378
    %v1709 = vpack.c.b16 %v1385, %v1379
    %v1710 = vpack.c.b16 %v1392, %v1386
    %v1711 = vpack.c.b16 %v1393, %v1387
    %v1712 = vpack.c.b16 %v1394, %v1388
    %v1713 = vpack.c.b16 %v1395, %v1389
    %v1714 = vpack.c.b16 %v1396, %v1390
    %v1715 = vpack.c.b16 %v1397, %v1391
    %v1716 = vpack.c.b16 %v1404, %v1398
    %v1717 = vpack.c.b16 %v1405, %v1399
    %v1718 = vpack.c.b16 %v1406, %v1400
    %v1719 = vpack.c.b16 %v1407, %v1401
    %v1720 = vpack.c.b16 %v1408, %v1402
    %v1721 = vpack.c.b16 %v1409, %v1403
    %v1722 = vpack.c.b16 %v1416, %v1410
    %v1723 = vpack.c.b16 %v1417, %v1411
    %v1724 = vpack.c.b16 %v1418, %v1412
    %v1725 = vpack.c.b16 %v1419, %v1413
    %v1726 = vpack.c.b16 %v1420, %v1414
    %v1727 = vpack.c.b16 %v1421, %v1415
    %v1728 = vpack.c.b16 %v1428, %v1422
    %v1729 = vpack.c.b16 %v1429, %v1423
    %v1730 = vpack.c.b16 %v1430, %v1424
    %v1731 = vpack.c.b16 %v1431, %v1425
    %v1732 = vpack.c.b16 %v1432, %v1426
    %v1733 = vpack.c.b16 %v1433, %v1427
    %v1734 = vpack.c.b16 %v1440, %v1434
    %v1735 = vpack.c.b16 %v1441, %v1435
    %v1736 = vpack.c.b16 %v1442, %v1436
    %v1737 = vpack.c.b16 %v1443, %v1437
    %v1738 = vpack.c.b16 %v1444, %v1438
    %v1739 = vpack.c.b16 %v1445, %v1439
    %v1740 = vpack.c.b16 %v1452, %v1446
    %v1741 = vpack.c.b16 %v1453, %v1447
    %v1742 = vpack.c.b16 %v1454, %v1448
    %v1743 = vpack.c.b16 %v1455, %v1449
    %v1744 = vpack.c.b16 %v1456, %v1450
    %v1745 = vpack.c.b16 %v1457, %v1451
    %v1746 = vpack.c.b16 %v1464, %v1458
    %v1747 = vpack.c.b16 %v1465, %v1459
    %v1748 = vpack.c.b16 %v1466, %v1460
    %v1749 = vpack.c.b16 %v1467, %v1461
    %v1750 = vpack.c.b16 %v1468, %v1462
    %v1751 = vpack.c.b16 %v1469, %v1463
    %v1752 = vpack.c.b16 %v1476, %v1470
    %v1753 = vpack.c.b16 %v1477, %v1471
    %v1754 = vpack.c.b16 %v1478, %v1472
    %v1755 = vpack.c.b16 %v1479, %v1473
    %v1756 = vpack.c.b16 %v1480, %v1474
    %v1757 = vpack.c.b16 %v1481, %v1475
    %v1758 = vpack.c.b16 %v1488, %v1482
    %v1759 = vpack.c.b16 %v1489, %v1483
    %v1760 = vpack.c.b16 %v1490, %v1484
    %v1761 = vpack.c.b16 %v1491, %v1485
    %v1762 = vpack.c.b16 %v1492, %v1486
    %v1763 = vpack.c.b16 %v1493, %v1487
    %v1764 = vpack.c.b16 %v1500, %v1494
    %v1765 = vpack.c.b16 %v1501, %v1495
    %v1766 = vpack.c.b16 %v1502, %v1496
    %v1767 = vpack.c.b16 %v1503, %v1497
    %v1768 = vpack.c.b16 %v1504, %v1498
    %v1769 = vpack.c.b16 %v1505, %v1499
    %v1770 = vpack.c.b16 %v1512, %v1506
    %v1771 = vpack.c.b16 %v1513, %v1507
    %v1772 = vpack.c.b16 %v1514, %v1508
    %v1773 = vpack.c.b16 %v1515, %v1509
    %v1774 = vpack.c.b16 %v1516, %v1510
    %v1775 = vpack.c.b16 %v1517, %v1511
    %v1776 = vpack.c.b16 %v1524, %v1518
    %v1777 = vpack.c.b16 %v1525, %v1519
    %v1778 = vpack.c.b16 %v1526, %v1520
    %v1779 = vpack.c.b16 %v1527, %v1521
    %v1780 = vpack.c.b16 %v1528, %v1522
    %v1781 = vpack.c.b16 %v1529, %v1523
    %v1782 = vpack.c.b16 %v1536, %v1530
    %v1783 = vpack.c.b16 %v1537, %v1531
    %v1784 = vpack.c.b16 %v1538, %v1532
    %v1785 = vpack.c.b16 %v1539, %v1533
    %v1786 = vpack.c.b16 %v1540, %v1534
    %v1787 = vpack.c.b16 %v1541, %v1535
    %v1788 = vpack.c.b16 %v1548, %v1542
    %v1789 = vpack.c.b16 %v1549, %v1543
    %v1790 = vpack.c.b16 %v1550, %v1544
    %v1791 = vpack.c.b16 %v1551, %v1545
    %v1792 = vpack.c.b16 %v1552, %v1546
    %v1793 = vpack.c.b16 %v1553, %v1547
    %v1794 = vpack.c.b16 %v1560, %v1554
    %v1795 = vpack.c.b16 %v1561, %v1555
    %v1796 = vpack.c.b16 %v1562, %v1556
    %v1797 = vpack.c.b16 %v1563, %v1557
    %v1798 = vpack.c.b16 %v1564, %v1558
    %v1799 = vpack.c.b16 %v1565, %v1559
    %v1800 = vpack.c.b16 %v1572, %v1566
    %v1801 = vpack.c.b16 %v1573, %v1567
    %v1802 = vpack.c.b16 %v1574, %v1568
    %v1803 = vpack.c.b16 %v1575, %v1569
    %v1804 = vpack.c.b16 %v1576, %v1570
    %v1805 = vpack.c.b16 %v1577, %v1571
    %v1806 = vpack.c.b16 %v1584, %v1578
    %v1807 = vpack.c.b16 %v1585, %v1579
    %v1808 = vpack.c.b16 %v1586, %v1580
    %v1809 = vpack.c.b16 %v1587, %v1581
    %v1810 = vpack.c.b16 %v1588, %v1582
    %v1811 = vpack.c.b16 %v1589, %v1583
    %v1812 = vpack.c.b16 %v1596, %v1590
    %v1813 = vpack.c.b16 %v1597, %v1591
    %v1814 = vpack.c.b16 %v1598, %v1592
    %v1815 = vpack.c.b16 %v1599, %v1593
    %v1816 = vpack.c.b16 %v1600, %v1594
    %v1817 = vpack.c.b16 %v1601, %v1595
    %v1818 = vpack.c.b16 %v1608, %v1602
    %v1819 = vpack.c.b16 %v1609, %v1603
    %v1820 = vpack.c.b16 %v1610, %v1604
    %v1821 = vpack.c.b16 %v1611, %v1605
    %v1822 = vpack.c.b16 %v1612, %v1606
    %v1823 = vpack.c.b16 %v1613, %v1607
    %v1824 = vpack.c.b16 %v1620, %v1614
    %v1825 = vpack.c.b16 %v1621, %v1615
    %v1826 = vpack.c.b16 %v1622, %v1616
    %v1827 = vpack.c.b16 %v1623, %v1617
    %v1828 = vpack.c.b16 %v1624, %v1618
    %v1829 = vpack.c.b16 %v1625, %v1619
    %v1830 = vpack.c.b16 %v1632, %v1626
    %v1831 = vpack.c.b16 %v1633, %v1627
    %v1832 = vpack.c.b16 %v1634, %v1628
    %v1833 = vpack.c.b16 %v1635, %v1629
    %v1834 = vpack.c.b16 %v1636, %v1630
    %v1835 = vpack.c.b16 %v1637, %v1631
    %v1836 = vpack.c.b16 %v1644, %v1638
    %v1837 = vpack.c.b16 %v1645, %v1639
    %v1838 = vpack.c.b16 %v1646, %v1640
    %v1839 = vpack.c.b16 %v1647, %v1641
    %v1840 = vpack.c.b16 %v1648, %v1642
    %v1841 = vpack.c.b16 %v1649, %v1643
    %2034 = vmatpush.bf16.msra.mxu0 %v1692
    %2035 = vmatpush.bf16.msra.mxu0 %v1686
    %2036 = vmatpush.bf16.msra.mxu0 %v1680
    %2037 = vmatpush.bf16.msra.mxu0 %v1674
    %2038 = vmatpush.bf16.msra.mxu0 %v1668
    %2039 = vmatpush.bf16.msra.mxu0 %v1662
    %2040 = vmatpush.bf16.msra.mxu0 %v1656
    %2041 = vmatpush.bf16.msra.mxu0 %v1650
    %2042 = vmatmul.bf16.gmra.mxu0 %v864
    %v2043 = vpop.f32.mrf.mxu0
    %v2044 = vadd.f32 %v1062, %v2043
    %v2045 = vpop.f32.mrf.mxu0
    %2046 = vdwg.mxu0
    %2047 = vmatpush.bf16.msra.mxu0 %v1740
    %2048 = vmatpush.bf16.msra.mxu0 %v1734
    %2049 = vmatpush.bf16.msra.mxu0 %v1728
    %2050 = vmatpush.bf16.msra.mxu0 %v1722
    %2051 = vmatpush.bf16.msra.mxu0 %v1716
    %2052 = vmatpush.bf16.msra.mxu0 %v1710
    %2053 = vmatpush.bf16.msra.mxu0 %v1704
    %2054 = vmatpush.bf16.msra.mxu0 %v1698
    %2055 = vmatmul.bf16.gmra.mxu0 %v865
    %v2056 = vpop.f32.mrf.mxu0
    %v2057 = vadd.f32 %v2044, %v2056
    %v2058 = vpop.f32.mrf.mxu0
    %2059 = vdwg.mxu0
    %2060 = vmatpush.bf16.msra.mxu0 %v1788
    %2061 = vmatpush.bf16.msra.mxu0 %v1782
    %2062 = vmatpush.bf16.msra.mxu0 %v1776
    %2063 = vmatpush.bf16.msra.mxu0 %v1770
    %2064 = vmatpush.bf16.msra.mxu0 %v1764
    %2065 = vmatpush.bf16.msra.mxu0 %v1758
    %2066 = vmatpush.bf16.msra.mxu0 %v1752
    %2067 = vmatpush.bf16.msra.mxu0 %v1746
    %2068 = vmatmul.bf16.gmra.mxu0 %v866
    %v2069 = vpop.f32.mrf.mxu0
    %v2070 = vadd.f32 %v2057, %v2069
    %v2071 = vpop.f32.mrf.mxu0
    %2072 = vdwg.mxu0
    %2073 = vmatpush.bf16.msra.mxu0 %v1836
    %2074 = vmatpush.bf16.msra.mxu0 %v1830
    %2075 = vmatpush.bf16.msra.mxu0 %v1824
    %2076 = vmatpush.bf16.msra.mxu0 %v1818
    %2077 = vmatpush.bf16.msra.mxu0 %v1812
    %2078 = vmatpush.bf16.msra.mxu0 %v1806
    %2079 = vmatpush.bf16.msra.mxu0 %v1800
    %2080 = vmatpush.bf16.msra.mxu0 %v1794
    %2081 = vmatmul.bf16.gmra.mxu0 %v867
    %v2082 = vpop.f32.mrf.mxu0
    %v2083 = vadd.f32 %v2070, %v2082
    %v2084 = vpop.f32.mrf.mxu0
    %2085 = vdwg.mxu0
    %2086 = vmatpush.bf16.msra.mxu0 %v1693
    %2087 = vmatpush.bf16.msra.mxu0 %v1687
    %2088 = vmatpush.bf16.msra.mxu0 %v1681
    %2089 = vmatpush.bf16.msra.mxu0 %v1675
    %2090 = vmatpush.bf16.msra.mxu0 %v1669
    %2091 = vmatpush.bf16.msra.mxu0 %v1663
    %2092 = vmatpush.bf16.msra.mxu0 %v1657
    %2093 = vmatpush.bf16.msra.mxu0 %v1651
    %2094 = vmatmul.bf16.gmra.mxu0 %v864
    %v2095 = vpop.f32.mrf.mxu0
    %v2096 = vadd.f32 %v1063, %v2095
    %v2097 = vpop.f32.mrf.mxu0
    %2098 = vdwg.mxu0
    %2099 = vmatpush.bf16.msra.mxu0 %v1741
    %2100 = vmatpush.bf16.msra.mxu0 %v1735
    %2101 = vmatpush.bf16.msra.mxu0 %v1729
    %2102 = vmatpush.bf16.msra.mxu0 %v1723
    %2103 = vmatpush.bf16.msra.mxu0 %v1717
    %2104 = vmatpush.bf16.msra.mxu0 %v1711
    %2105 = vmatpush.bf16.msra.mxu0 %v1705
    %2106 = vmatpush.bf16.msra.mxu0 %v1699
    %2107 = vmatmul.bf16.gmra.mxu0 %v865
    %v2108 = vpop.f32.mrf.mxu0
    %v2109 = vadd.f32 %v2096, %v2108
    %v2110 = vpop.f32.mrf.mxu0
    %2111 = vdwg.mxu0
    %2112 = vmatpush.bf16.msra.mxu0 %v1789
    %2113 = vmatpush.bf16.msra.mxu0 %v1783
    %2114 = vmatpush.bf16.msra.mxu0 %v1777
    %2115 = vmatpush.bf16.msra.mxu0 %v1771
    %2116 = vmatpush.bf16.msra.mxu0 %v1765
    %2117 = vmatpush.bf16.msra.mxu0 %v1759
    %2118 = vmatpush.bf16.msra.mxu0 %v1753
    %2119 = vmatpush.bf16.msra.mxu0 %v1747
    %2120 = vmatmul.bf16.gmra.mxu0 %v866
    %v2121 = vpop.f32.mrf.mxu0
    %v2122 = vadd.f32 %v2109, %v2121
    %v2123 = vpop.f32.mrf.mxu0
    %2124 = vdwg.mxu0
    %2125 = vmatpush.bf16.msra.mxu0 %v1837
    %2126 = vmatpush.bf16.msra.mxu0 %v1831
    %2127 = vmatpush.bf16.msra.mxu0 %v1825
    %2128 = vmatpush.bf16.msra.mxu0 %v1819
    %2129 = vmatpush.bf16.msra.mxu0 %v1813
    %2130 = vmatpush.bf16.msra.mxu0 %v1807
    %2131 = vmatpush.bf16.msra.mxu0 %v1801
    %2132 = vmatpush.bf16.msra.mxu0 %v1795
    %2133 = vmatmul.bf16.gmra.mxu0 %v867
    %v2134 = vpop.f32.mrf.mxu0
    %v2135 = vadd.f32 %v2122, %v2134
    %v2136 = vpop.f32.mrf.mxu0
    %2137 = vdwg.mxu0
    %2138 = vmatpush.bf16.msra.mxu0 %v1694
    %2139 = vmatpush.bf16.msra.mxu0 %v1688
    %2140 = vmatpush.bf16.msra.mxu0 %v1682
    %2141 = vmatpush.bf16.msra.mxu0 %v1676
    %2142 = vmatpush.bf16.msra.mxu0 %v1670
    %2143 = vmatpush.bf16.msra.mxu0 %v1664
    %2144 = vmatpush.bf16.msra.mxu0 %v1658
    %2145 = vmatpush.bf16.msra.mxu0 %v1652
    %2146 = vmatmul.bf16.gmra.mxu0 %v864
    %v2147 = vpop.f32.mrf.mxu0
    %v2148 = vadd.f32 %v1064, %v2147
    %v2149 = vpop.f32.mrf.mxu0
    %2150 = vdwg.mxu0
    %2151 = vmatpush.bf16.msra.mxu0 %v1742
    %2152 = vmatpush.bf16.msra.mxu0 %v1736
    %2153 = vmatpush.bf16.msra.mxu0 %v1730
    %2154 = vmatpush.bf16.msra.mxu0 %v1724
    %2155 = vmatpush.bf16.msra.mxu0 %v1718
    %2156 = vmatpush.bf16.msra.mxu0 %v1712
    %2157 = vmatpush.bf16.msra.mxu0 %v1706
    %2158 = vmatpush.bf16.msra.mxu0 %v1700
    %2159 = vmatmul.bf16.gmra.mxu0 %v865
    %v2160 = vpop.f32.mrf.mxu0
    %v2161 = vadd.f32 %v2148, %v2160
    %v2162 = vpop.f32.mrf.mxu0
    %2163 = vdwg.mxu0
    %2164 = vmatpush.bf16.msra.mxu0 %v1790
    %2165 = vmatpush.bf16.msra.mxu0 %v1784
    %2166 = vmatpush.bf16.msra.mxu0 %v1778
    %2167 = vmatpush.bf16.msra.mxu0 %v1772
    %2168 = vmatpush.bf16.msra.mxu0 %v1766
    %2169 = vmatpush.bf16.msra.mxu0 %v1760
    %2170 = vmatpush.bf16.msra.mxu0 %v1754
    %2171 = vmatpush.bf16.msra.mxu0 %v1748
    %2172 = vmatmul.bf16.gmra.mxu0 %v866
    %v2173 = vpop.f32.mrf.mxu0
    %v2174 = vadd.f32 %v2161, %v2173
    %v2175 = vpop.f32.mrf.mxu0
    %2176 = vdwg.mxu0
    %2177 = vmatpush.bf16.msra.mxu0 %v1838
    %2178 = vmatpush.bf16.msra.mxu0 %v1832
    %2179 = vmatpush.bf16.msra.mxu0 %v1826
    %2180 = vmatpush.bf16.msra.mxu0 %v1820
    %2181 = vmatpush.bf16.msra.mxu0 %v1814
    %2182 = vmatpush.bf16.msra.mxu0 %v1808
    %2183 = vmatpush.bf16.msra.mxu0 %v1802
    %2184 = vmatpush.bf16.msra.mxu0 %v1796
    %2185 = vmatmul.bf16.gmra.mxu0 %v867
    %v2186 = vpop.f32.mrf.mxu0
    %v2187 = vadd.f32 %v2174, %v2186
    %v2188 = vpop.f32.mrf.mxu0
    %2189 = vdwg.mxu0
    %2190 = vmatpush.bf16.msra.mxu0 %v1695
    %2191 = vmatpush.bf16.msra.mxu0 %v1689
    %2192 = vmatpush.bf16.msra.mxu0 %v1683
    %2193 = vmatpush.bf16.msra.mxu0 %v1677
    %2194 = vmatpush.bf16.msra.mxu0 %v1671
    %2195 = vmatpush.bf16.msra.mxu0 %v1665
    %2196 = vmatpush.bf16.msra.mxu0 %v1659
    %2197 = vmatpush.bf16.msra.mxu0 %v1653
    %2198 = vmatmul.bf16.gmra.mxu0 %v864
    %v2199 = vpop.f32.mrf.mxu0
    %v2200 = vadd.f32 %v1065, %v2199
    %v2201 = vpop.f32.mrf.mxu0
    %2202 = vdwg.mxu0
    %2203 = vmatpush.bf16.msra.mxu0 %v1743
    %2204 = vmatpush.bf16.msra.mxu0 %v1737
    %2205 = vmatpush.bf16.msra.mxu0 %v1731
    %2206 = vmatpush.bf16.msra.mxu0 %v1725
    %2207 = vmatpush.bf16.msra.mxu0 %v1719
    %2208 = vmatpush.bf16.msra.mxu0 %v1713
    %2209 = vmatpush.bf16.msra.mxu0 %v1707
    %2210 = vmatpush.bf16.msra.mxu0 %v1701
    %2211 = vmatmul.bf16.gmra.mxu0 %v865
    %v2212 = vpop.f32.mrf.mxu0
    %v2213 = vadd.f32 %v2200, %v2212
    %v2214 = vpop.f32.mrf.mxu0
    %2215 = vdwg.mxu0
    %2216 = vmatpush.bf16.msra.mxu0 %v1791
    %2217 = vmatpush.bf16.msra.mxu0 %v1785
    %2218 = vmatpush.bf16.msra.mxu0 %v1779
    %2219 = vmatpush.bf16.msra.mxu0 %v1773
    %2220 = vmatpush.bf16.msra.mxu0 %v1767
    %2221 = vmatpush.bf16.msra.mxu0 %v1761
    %2222 = vmatpush.bf16.msra.mxu0 %v1755
    %2223 = vmatpush.bf16.msra.mxu0 %v1749
    %2224 = vmatmul.bf16.gmra.mxu0 %v866
    %v2225 = vpop.f32.mrf.mxu0
    %v2226 = vadd.f32 %v2213, %v2225
    %v2227 = vpop.f32.mrf.mxu0
    %2228 = vdwg.mxu0
    %2229 = vmatpush.bf16.msra.mxu0 %v1839
    %2230 = vmatpush.bf16.msra.mxu0 %v1833
    %2231 = vmatpush.bf16.msra.mxu0 %v1827
    %2232 = vmatpush.bf16.msra.mxu0 %v1821
    %2233 = vmatpush.bf16.msra.mxu0 %v1815
    %2234 = vmatpush.bf16.msra.mxu0 %v1809
    %2235 = vmatpush.bf16.msra.mxu0 %v1803
    %2236 = vmatpush.bf16.msra.mxu0 %v1797
    %2237 = vmatmul.bf16.gmra.mxu0 %v867
    %v2238 = vpop.f32.mrf.mxu0
    %v2239 = vadd.f32 %v2226, %v2238
    %v2240 = vpop.f32.mrf.mxu0
    %2241 = vdwg.mxu0
    %2242 = vmatpush.bf16.msra.mxu0 %v1696
    %2243 = vmatpush.bf16.msra.mxu0 %v1690
    %2244 = vmatpush.bf16.msra.mxu0 %v1684
    %2245 = vmatpush.bf16.msra.mxu0 %v1678
    %2246 = vmatpush.bf16.msra.mxu0 %v1672
    %2247 = vmatpush.bf16.msra.mxu0 %v1666
    %2248 = vmatpush.bf16.msra.mxu0 %v1660
    %2249 = vmatpush.bf16.msra.mxu0 %v1654
    %2250 = vmatmul.bf16.gmra.mxu0 %v864
    %v2251 = vpop.f32.mrf.mxu0
    %v2252 = vadd.f32 %v1066, %v2251
    %v2253 = vpop.f32.mrf.mxu0
    %2254 = vdwg.mxu0
    %2255 = vmatpush.bf16.msra.mxu0 %v1744
    %2256 = vmatpush.bf16.msra.mxu0 %v1738
    %2257 = vmatpush.bf16.msra.mxu0 %v1732
    %2258 = vmatpush.bf16.msra.mxu0 %v1726
    %2259 = vmatpush.bf16.msra.mxu0 %v1720
    %2260 = vmatpush.bf16.msra.mxu0 %v1714
    %2261 = vmatpush.bf16.msra.mxu0 %v1708
    %2262 = vmatpush.bf16.msra.mxu0 %v1702
    %2263 = vmatmul.bf16.gmra.mxu0 %v865
    %v2264 = vpop.f32.mrf.mxu0
    %v2265 = vadd.f32 %v2252, %v2264
    %v2266 = vpop.f32.mrf.mxu0
    %2267 = vdwg.mxu0
    %2268 = vmatpush.bf16.msra.mxu0 %v1792
    %2269 = vmatpush.bf16.msra.mxu0 %v1786
    %2270 = vmatpush.bf16.msra.mxu0 %v1780
    %2271 = vmatpush.bf16.msra.mxu0 %v1774
    %2272 = vmatpush.bf16.msra.mxu0 %v1768
    %2273 = vmatpush.bf16.msra.mxu0 %v1762
    %2274 = vmatpush.bf16.msra.mxu0 %v1756
    %2275 = vmatpush.bf16.msra.mxu0 %v1750
    %2276 = vmatmul.bf16.gmra.mxu0 %v866
    %v2277 = vpop.f32.mrf.mxu0
    %v2278 = vadd.f32 %v2265, %v2277
    %v2279 = vpop.f32.mrf.mxu0
    %2280 = vdwg.mxu0
    %2281 = vmatpush.bf16.msra.mxu0 %v1840
    %2282 = vmatpush.bf16.msra.mxu0 %v1834
    %2283 = vmatpush.bf16.msra.mxu0 %v1828
    %2284 = vmatpush.bf16.msra.mxu0 %v1822
    %2285 = vmatpush.bf16.msra.mxu0 %v1816
    %2286 = vmatpush.bf16.msra.mxu0 %v1810
    %2287 = vmatpush.bf16.msra.mxu0 %v1804
    %2288 = vmatpush.bf16.msra.mxu0 %v1798
    %2289 = vmatmul.bf16.gmra.mxu0 %v867
    %v2290 = vpop.f32.mrf.mxu0
    %v2291 = vadd.f32 %v2278, %v2290
    %v2292 = vpop.f32.mrf.mxu0
    %2293 = vdwg.mxu0
    %2294 = vmatpush.bf16.msra.mxu0 %v1697
    %2295 = vmatpush.bf16.msra.mxu0 %v1691
    %2296 = vmatpush.bf16.msra.mxu0 %v1685
    %2297 = vmatpush.bf16.msra.mxu0 %v1679
    %2298 = vmatpush.bf16.msra.mxu0 %v1673
    %2299 = vmatpush.bf16.msra.mxu0 %v1667
    %2300 = vmatpush.bf16.msra.mxu0 %v1661
    %2301 = vmatpush.bf16.msra.mxu0 %v1655
    %2302 = vmatmul.bf16.gmra.mxu0 %v864
    %v2303 = vpop.f32.mrf.mxu0
    %v2304 = vadd.f32 %v1067, %v2303
    %v2305 = vpop.f32.mrf.mxu0
    %2306 = vdwg.mxu0
    %2307 = vmatpush.bf16.msra.mxu0 %v1745
    %2308 = vmatpush.bf16.msra.mxu0 %v1739
    %2309 = vmatpush.bf16.msra.mxu0 %v1733
    %2310 = vmatpush.bf16.msra.mxu0 %v1727
    %2311 = vmatpush.bf16.msra.mxu0 %v1721
    %2312 = vmatpush.bf16.msra.mxu0 %v1715
    %2313 = vmatpush.bf16.msra.mxu0 %v1709
    %2314 = vmatpush.bf16.msra.mxu0 %v1703
    %2315 = vmatmul.bf16.gmra.mxu0 %v865
    %v2316 = vpop.f32.mrf.mxu0
    %v2317 = vadd.f32 %v2304, %v2316
    %v2318 = vpop.f32.mrf.mxu0
    %2319 = vdwg.mxu0
    %2320 = vmatpush.bf16.msra.mxu0 %v1793
    %2321 = vmatpush.bf16.msra.mxu0 %v1787
    %2322 = vmatpush.bf16.msra.mxu0 %v1781
    %2323 = vmatpush.bf16.msra.mxu0 %v1775
    %2324 = vmatpush.bf16.msra.mxu0 %v1769
    %2325 = vmatpush.bf16.msra.mxu0 %v1763
    %2326 = vmatpush.bf16.msra.mxu0 %v1757
    %2327 = vmatpush.bf16.msra.mxu0 %v1751
    %2328 = vmatmul.bf16.gmra.mxu0 %v866
    %v2329 = vpop.f32.mrf.mxu0
    %v2330 = vadd.f32 %v2317, %v2329
    %v2331 = vpop.f32.mrf.mxu0
    %2332 = vdwg.mxu0
    %2333 = vmatpush.bf16.msra.mxu0 %v1841
    %2334 = vmatpush.bf16.msra.mxu0 %v1835
    %2335 = vmatpush.bf16.msra.mxu0 %v1829
    %2336 = vmatpush.bf16.msra.mxu0 %v1823
    %2337 = vmatpush.bf16.msra.mxu0 %v1817
    %2338 = vmatpush.bf16.msra.mxu0 %v1811
    %2339 = vmatpush.bf16.msra.mxu0 %v1805
    %2340 = vmatpush.bf16.msra.mxu0 %v1799
    %2341 = vmatmul.bf16.gmra.mxu0 %v867
    %v2342 = vpop.f32.mrf.mxu0
    %v2343 = vadd.f32 %v2330, %v2342
    %v2344 = vpop.f32.mrf.mxu0
    %2345 = vdwg.mxu0
    %v2346 = vxor.u32 %v2083, 2147483648
    %v2347 = vxor.u32 %v2135, 2147483648
    %v2348 = vxor.u32 %v2187, 2147483648
    %v2349 = vxor.u32 %v2239, 2147483648
    %v2350 = vxor.u32 %v2291, 2147483648
    %v2351 = vxor.u32 %v2343, 2147483648
    %v2352 = vmul.f32 %v2346, 1.442695
    %v2353 = vpow.pop %v2352
    %v2354 = vmul.f32 %v2347, 1.442695
    %v2355 = vpow.pop %v2354
    %v2356 = vmul.f32 %v2348, 1.442695
    %v2357 = vpow.pop %v2356
    %v2358 = vmul.f32 %v2349, 1.442695
    %v2359 = vpow.pop %v2358
    %v2360 = vmul.f32 %v2350, 1.442695
    %v2361 = vpow.pop %v2360
    %v2362 = vmul.f32 %v2351, 1.442695
    %v2363 = vpow.pop %v2362
    %v2364 = vadd.f32 %v2353, 1.0
    %v2365 = vadd.f32 %v2355, 1.0
    %v2366 = vadd.f32 %v2357, 1.0
    %v2367 = vadd.f32 %v2359, 1.0
    %v2368 = vadd.f32 %v2361, 1.0
    %v2369 = vadd.f32 %v2363, 1.0
    %v2370 = vrcp.pop %v2364
    %v2371 = vmul.f32 %v2364, %v2370
    %v2372 = vsub.f32 1.0, %v2371
    %v2373 = vmul.f32 %v2370, %v2372
    %v2374 = vadd.f32 %v2370, %v2373
    %vm2375 = vweird.f32 %v2364
    %vm2376 = vweird.f32 %v2370
    %vm2377 = vmor %vm2375, %vm2376
    %v2378 = vsel %vm2377, %v2370, %v2374
    %v2379 = vand.u32 2147483647, %v2364
    %vm2380 = vcmp.eq.f32.partialorder %v2379, 8.507059e+37
    %v2381 = vand.u32 %v2364, 2147483648
    %v2382 = vor.u32 1.1754944e-38, %v2381
    %v2383 = vsel %vm2380, %v2382, %v2378
    %v2384 = vmul.f32 1.0, %v2383
    %v2385 = vrcp.pop %v2365
    %v2386 = vmul.f32 %v2365, %v2385
    %v2387 = vsub.f32 1.0, %v2386
    %v2388 = vmul.f32 %v2385, %v2387
    %v2389 = vadd.f32 %v2385, %v2388
    %vm2390 = vweird.f32 %v2365
    %vm2391 = vweird.f32 %v2385
    %vm2392 = vmor %vm2390, %vm2391
    %v2393 = vsel %vm2392, %v2385, %v2389
    %v2394 = vand.u32 2147483647, %v2365
    %vm2395 = vcmp.eq.f32.partialorder %v2394, 8.507059e+37
    %v2396 = vand.u32 %v2365, 2147483648
    %v2397 = vor.u32 1.1754944e-38, %v2396
    %v2398 = vsel %vm2395, %v2397, %v2393
    %v2399 = vmul.f32 1.0, %v2398
    %v2400 = vrcp.pop %v2366
    %v2401 = vmul.f32 %v2366, %v2400
    %v2402 = vsub.f32 1.0, %v2401
    %v2403 = vmul.f32 %v2400, %v2402
    %v2404 = vadd.f32 %v2400, %v2403
    %vm2405 = vweird.f32 %v2366
    %vm2406 = vweird.f32 %v2400
    %vm2407 = vmor %vm2405, %vm2406
    %v2408 = vsel %vm2407, %v2400, %v2404
    %v2409 = vand.u32 2147483647, %v2366
    %vm2410 = vcmp.eq.f32.partialorder %v2409, 8.507059e+37
    %v2411 = vand.u32 %v2366, 2147483648
    %v2412 = vor.u32 1.1754944e-38, %v2411
    %v2413 = vsel %vm2410, %v2412, %v2408
    %v2414 = vmul.f32 1.0, %v2413
    %v2415 = vrcp.pop %v2367
    %v2416 = vmul.f32 %v2367, %v2415
    %v2417 = vsub.f32 1.0, %v2416
    %v2418 = vmul.f32 %v2415, %v2417
    %v2419 = vadd.f32 %v2415, %v2418
    %vm2420 = vweird.f32 %v2367
    %vm2421 = vweird.f32 %v2415
    %vm2422 = vmor %vm2420, %vm2421
    %v2423 = vsel %vm2422, %v2415, %v2419
    %v2424 = vand.u32 2147483647, %v2367
    %vm2425 = vcmp.eq.f32.partialorder %v2424, 8.507059e+37
    %v2426 = vand.u32 %v2367, 2147483648
    %v2427 = vor.u32 1.1754944e-38, %v2426
    %v2428 = vsel %vm2425, %v2427, %v2423
    %v2429 = vmul.f32 1.0, %v2428
    %v2430 = vrcp.pop %v2368
    %v2431 = vmul.f32 %v2368, %v2430
    %v2432 = vsub.f32 1.0, %v2431
    %v2433 = vmul.f32 %v2430, %v2432
    %v2434 = vadd.f32 %v2430, %v2433
    %vm2435 = vweird.f32 %v2368
    %vm2436 = vweird.f32 %v2430
    %vm2437 = vmor %vm2435, %vm2436
    %v2438 = vsel %vm2437, %v2430, %v2434
    %v2439 = vand.u32 2147483647, %v2368
    %vm2440 = vcmp.eq.f32.partialorder %v2439, 8.507059e+37
    %v2441 = vand.u32 %v2368, 2147483648
    %v2442 = vor.u32 1.1754944e-38, %v2441
    %v2443 = vsel %vm2440, %v2442, %v2438
    %v2444 = vmul.f32 1.0, %v2443
    %v2445 = vrcp.pop %v2369
    %v2446 = vmul.f32 %v2369, %v2445
    %v2447 = vsub.f32 1.0, %v2446
    %v2448 = vmul.f32 %v2445, %v2447
    %v2449 = vadd.f32 %v2445, %v2448
    %vm2450 = vweird.f32 %v2369
    %vm2451 = vweird.f32 %v2445
    %vm2452 = vmor %vm2450, %vm2451
    %v2453 = vsel %vm2452, %v2445, %v2449
    %v2454 = vand.u32 2147483647, %v2369
    %vm2455 = vcmp.eq.f32.partialorder %v2454, 8.507059e+37
    %v2456 = vand.u32 %v2369, 2147483648
    %v2457 = vor.u32 1.1754944e-38, %v2456
    %v2458 = vsel %vm2455, %v2457, %v2453
    %v2459 = vmul.f32 1.0, %v2458
    %2460 = vst [vmem:[#allocation14] sm:$0xff] %v2384
    %2461 = vst [vmem:[#allocation14 + $0x8] sm:$0xff] %v2399
    %2462 = vst [vmem:[#allocation14 + $0x10] sm:$0xff] %v2414
    %2463 = vst [vmem:[#allocation14 + $0x18] sm:$0xff] %v2429
    %2464 = vst [vmem:[#allocation14 + $0x20] sm:$0xff] %v2444
    %2465 = vst [vmem:[#allocation14 + $0x28] sm:$0xff] %v2459
    // Predicated region
    $region66: #{tpu_custom_call.1} parent=1 // pred_check
      _
    $region67: #{tpu_custom_call.1} parent=1 // pred_check_branch
      %2467 = sbr.rel (0) target = $region69
    $region68: #{tpu_custom_call.1} parent=1 // pred_region
      %2469 = vsyncadd [#allocation4], 0
      %s2471 = sshll.u32 [#allocation14], 4
      %s2472 = int_to_ptr.vmem [resolvable:$true] %s2471
      %s2473 = sshll.u32 %s9, 4
      %s2474 = int_to_ptr.hbm [resolvable:$true] %s2473
      %2476 = dma.vmem_to_hbm [thread:$0]  %s2472, 768, %s2474, [#allocation4]
    $region69: #{tpu_custom_call.1} parent=1 // pred_fallthru
      _
    // Predicated region
    $region70: #{tpu_custom_call.1} parent=1 // pred_check
      _
    $region71: #{tpu_custom_call.1} parent=1 // pred_check_branch
      %2478 = sbr.rel (0) target = $region73
    $region72: #{tpu_custom_call.1} parent=1 // pred_region
      %2480 = dma.done [#allocation4], 768
    $region73: #{tpu_custom_call.1} parent=1 // pred_fallthru
      _
    %2481 = vsyncpa [#allocation3], 1
    %2482 = vsyncpa [#allocation6], 1
    %2483 = vsyncpa [#allocation9], 1
    %2484 = vsyncpa [#allocation12], 1
    %2485 = vsyncpa [#allocation4], 1

</llo_original>
